<compile_context>
chip_gen: v7x
topology: tpu7x:2x2x1
jax: 0.10.0
libtpu: 0.0.40
codegen_flags: <defaults>
</compile_context>

<pallas_src>
import functools
import math

import numpy as np

import jax
import jax.numpy as jnp
from jax.experimental import pallas as pl
from jax.experimental.pallas import tpu as pltpu

LRELU_A = 0.01


def _make_fused_kernel(nb, cin, cout, h, w):
    """Fused 2-layer ConvBlock kernel for one grid step (`nb` batch elems).

    Ref shapes:
      x_ref   : (nb, cin, h, w)       f32   NCHW input block
      w1_ref  : (3, cin*w, cout*w)    bf16  banded weights, layer 1 (per kh)
      b1_ref  : (1, cout*w)           f32   bias, channel-major lane layout
      w2_ref  : (3, cout*w, cout*w)   bf16  banded weights, layer 2
      b2_ref  : (1, cout*w)           f32   bias, layer 2
      o_ref   : (nb, cout, h, w)      f32   NCHW output block
      slab_ref: (nb*h, cin*w)         f32   VMEM scratch for in-kernel relayout
    """
    m = nb * h

    def kernel(x_ref, w1_ref, b1_ref, w2_ref, b2_ref, o_ref, slab_ref):
        # ---- NCHW -> channel-major lane slab (lane = c*w + x), in-kernel ---
        x = x_ref[...]                                    # (nb, cin, h, w)
        for c in range(cin):
            slab_ref[:, c * w:(c + 1) * w] = x[:, c].reshape(m, w)

        # Shift-and-mask matrices for the kh=0 / kh=2 taps: S_top moves each
        # row's contribution one output row down, S_bot one row up, zeroing
        # rows that would cross an image boundary (implements pad=1 along H
        # and isolates the images stacked along M).  Applied on the MXU
        # (plenty of slack here) -> no sublane relayout / halo buffers.
        ri = jax.lax.broadcasted_iota(jnp.int32, (m, m), 0)   # output row
        si = jax.lax.broadcasted_iota(jnp.int32, (m, m), 1)   # source row
        s_top = ((si == ri - 1) & (ri % h != 0)).astype(jnp.float32)
        s_bot = ((si == ri + 1) & (ri % h != h - 1)).astype(jnp.float32)

        def conv3x3_lrelu(x2d, w_ref, b_ref):
            xb = x2d.astype(jnp.bfloat16)                 # cast once per layer
            # One MXU matmul per kernel row kh; pad=1 along W is already
            # folded into the banded weights.  f32 accumulation throughout.
            y0 = jnp.dot(xb, w_ref[0], preferred_element_type=jnp.float32)
            y1 = jnp.dot(xb, w_ref[1], preferred_element_type=jnp.float32)
            y2 = jnp.dot(xb, w_ref[2], preferred_element_type=jnp.float32)
            acc = (y1
                   + jnp.dot(s_top, y0, preferred_element_type=jnp.float32)
                   + jnp.dot(s_bot, y2, preferred_element_type=jnp.float32)
                   + b_ref[...])                          # (1, N) bias bcast
            return jnp.where(acc >= 0, acc, LRELU_A * acc)  # LeakyReLU, f32

        a1 = conv3x3_lrelu(slab_ref[...], w1_ref, b1_ref)   # stays on-chip
        a2 = conv3x3_lrelu(a1, w2_ref, b2_ref)              # (m, cout*w) f32

        # ---- channel-major slab -> NCHW output (no wrapper transpose) ------
        for c in range(cout):
            o_ref[:, c, :, :] = a2[:, c * w:(c + 1) * w].reshape(nb, h, w)

    return kernel


def _num_tensorcores():
    """TensorCores visible to one device (2 on v7x, 1 on v5e/v6e)."""
    try:
        return max(1, int(getattr(jax.devices()[0], "num_cores", 1) or 1))
    except Exception:
        return 1


@functools.partial(jax.jit, static_argnames=("grid_steps",))
def conv_block_forward(x_nchw, prepped, grid_steps=1):
    """ConvBlock forward: NCHW in -> NCHW out (matches PyTorch semantics).

    `grid_steps` batch groups become grid iterations: use the number of
    TensorCores on v7x (megacore sharding), 1 on single-core chips.
    """
    w1, b1, w2, b2 = prepped            # nb_layers=2 fused; extend by chaining
    n, cin, h, w = x_nchw.shape
    assert n % grid_steps == 0
    nb = n // grid_steps
    wcin = cin * w
    wcout = w1.shape[2]
    cout = wcout // w

    kernel = _make_fused_kernel(nb, cin, cout, h, w)

    return pl.pallas_call(
        kernel,
        out_shape=jax.ShapeDtypeStruct((n, cout, h, w), jnp.float32),
        grid=(grid_steps,),
        in_specs=[
            pl.BlockSpec((nb, cin, h, w), lambda g: (g, 0, 0, 0)),
            pl.BlockSpec((3, wcin, wcout), lambda g: (0, 0, 0)),
            pl.BlockSpec((1, wcout), lambda g: (0, 0)),
            pl.BlockSpec((3, wcout, wcout), lambda g: (0, 0, 0)),
            pl.BlockSpec((1, wcout), lambda g: (0, 0)),
        ],
        out_specs=pl.BlockSpec((nb, cout, h, w), lambda g: (g, 0, 0, 0)),
        scratch_shapes=[pltpu.VMEM((nb * h, wcin), jnp.float32)],
        compiler_params=pltpu.CompilerParams(
            dimension_semantics=("parallel",)),
    )(x_nchw, w1, b1, w2, b2)


def init_conv_block_params(key, nb_layers, input_channels, output_channels,
                           kernel_size=3):
    """Deterministic synthetic parameters (PyTorch OIHW layout per layer)."""
    params = []
    cin = input_channels
    for _ in range(nb_layers):
        key, kw_key, kb_key = jax.random.split(key, 3)
        fan_in = cin * kernel_size * kernel_size
        bound = 1.0 / np.sqrt(fan_in)
        wgt = jax.random.uniform(
            kw_key, (output_channels, cin, kernel_size, kernel_size),
            jnp.float32, -bound, bound)
        b = jax.random.uniform(
            kb_key, (output_channels,), jnp.float32, -bound, bound)
        params.append((wgt, b))
        cin = output_channels
    return params


def prepare_params(params, w_size):
    """One-time re-layout: OIHW conv weights -> per-kh banded matmul weights.

    Lane layout is channel-major (lane = c*W + x).  For each layer the
    (Cout, Cin, 3, 3) kernel becomes 3 matrices (one per kh) of shape
    (Cin*W, Cout*W): entry (ci*W + wi, co*W + wo) holds weight[co, ci, kh, kw]
    with kw = wi - wo + 1; taps falling outside [0, W) are dropped, which
    implements the pad=1 zero padding along W.  Weights are stored as bf16
    for the MXU (f32 accumulation in-kernel); biases are pre-expanded along W
    and kept in f32.
    """
    prepped = []
    for w_oihw, b in params:
        wnp = np.asarray(jax.device_get(w_oihw))          # (Cout, Cin, 3, 3)
        cout, cin, kh_sz, kw_sz = wnp.shape
        assert (kh_sz, kw_sz) == (3, 3), "only kernel_size=3 implemented"
        banded = np.zeros((kh_sz, cin * w_size, cout * w_size), np.float32)
        for kh in range(kh_sz):
            for kw in range(kw_sz):
                tap = wnp[:, :, kh, kw].T                 # (Cin, Cout)
                for wo in range(w_size):
                    wi = wo + kw - 1
                    if 0 <= wi < w_size:
                        banded[kh, wi::w_size, wo::w_size] = tap
        bias = np.repeat(np.asarray(jax.device_get(b)), w_size).reshape(
            1, cout * w_size)
        prepped.append(jnp.asarray(banded, jnp.bfloat16))
        prepped.append(jnp.asarray(bias, jnp.float32))
    return tuple(prepped)


def _reference_forward(x_nchw, params, alpha=LRELU_A):
    """Pure-JAX f32 reference (lax conv) for correctness check."""
    y = x_nchw
    for w_oihw, b in params:
        y = jax.lax.conv_general_dilated(
            y, w_oihw, window_strides=(1, 1), padding=((1, 1), (1, 1)),
            dimension_numbers=("NCHW", "OIHW", "NCHW"))
        y = y + b.reshape(1, -1, 1, 1)
        y = jnp.where(y >= 0, y, alpha * y)
    return y


if __name__ == "__main__":
    # ConvBlock(ndim=2, nb_layers=2, input_channels=4, output_channels=8)
    NB_LAYERS = 2
    CIN, COUT = 4, 8
    N, H, W = 2, 16, 16

    key = jax.random.PRNGKey(0)
    key, x_key, p_key = jax.random.split(key, 3)

    x = jax.random.normal(x_key, (N, CIN, H, W), jnp.float32)
    params = init_conv_block_params(p_key, NB_LAYERS, CIN, COUT)
    prepped = prepare_params(params, W)

    # One grid step per TensorCore (v7x: batch sharded across both cores;
    # v5e/v6e: single grid step, whole batch stacked into the matmul M dim).
    grid_steps = math.gcd(N, _num_tensorcores())

    out = conv_block_forward(x, prepped, grid_steps=grid_steps)
    out = jax.block_until_ready(out)

    ref = _reference_forward(x, params)
    assert out.shape == (N, COUT, H, W), out.shape
    # bf16 matmul operands (f32 accumulate) -> looser tolerance than pure f32.
    max_err = float(jnp.max(jnp.abs(out - ref)))
    assert jnp.allclose(out, ref, atol=5e-2, rtol=5e-2), max_err

    print("KERNEL_OK")
</pallas_src>

<mosaic_0001>
module attributes {stable_mosaic.version = 11 : i64} {
  func.func @kernel(%arg0: i32, %arg1: memref<2x4x16x16xf32, #tpu.memory_space<vmem>>, %arg2: memref<3x64x128xbf16, #tpu.memory_space<vmem>>, %arg3: memref<1x128xf32, #tpu.memory_space<vmem>>, %arg4: memref<3x128x128xbf16, #tpu.memory_space<vmem>>, %arg5: memref<1x128xf32, #tpu.memory_space<vmem>>, %arg6: memref<2x8x16x16xf32, #tpu.memory_space<vmem>>, %arg7: memref<32x64xf32, #tpu.memory_space<vmem>>) attributes {dimension_semantics = [#tpu.dimension_semantics<parallel>], iteration_bounds = array<i64: 1>, scalar_prefetch = 0 : i64, scratch_operands = 1 : i64, tpu.core_type = #tpu.core_type<tc>, window_params = [{transform_indices = @transform_0, window_bounds = array<i64: 2, 4, 16, 16>}, {pipeline_mode = #tpu.pipeline_mode<synchronous>, transform_indices = @transform_1, window_bounds = array<i64: 3, 64, 128>}, {pipeline_mode = #tpu.pipeline_mode<synchronous>, transform_indices = @transform_2, window_bounds = array<i64: 1, 128>}, {pipeline_mode = #tpu.pipeline_mode<synchronous>, transform_indices = @transform_3, window_bounds = array<i64: 3, 128, 128>}, {pipeline_mode = #tpu.pipeline_mode<synchronous>, transform_indices = @transform_4, window_bounds = array<i64: 1, 128>}, {transform_indices = @transform_5, window_bounds = array<i64: 2, 8, 16, 16>}]} {
    %c0 = arith.constant 0 : index
    %c0_0 = arith.constant 0 : index
    %c0_1 = arith.constant 0 : index
    %c0_2 = arith.constant 0 : index
    %0 = vector.load %arg1[%c0, %c0_0, %c0_1, %c0_2] : memref<2x4x16x16xf32, #tpu.memory_space<vmem>>, vector<2x4x16x16xf32>
    %1 = vector.extract_strided_slice %0 {offsets = [0, 0, 0, 0], sizes = [2, 1, 16, 16], strides = [1, 1, 1, 1]} : vector<2x4x16x16xf32> to vector<2x1x16x16xf32>
    %2 = vector.shape_cast %1 : vector<2x1x16x16xf32> to vector<2x16x16xf32>
    %3 = vector.shape_cast %2 : vector<2x16x16xf32> to vector<32x16xf32>
    %c0_3 = arith.constant 0 : index
    %c0_4 = arith.constant 0 : index
    %4 = vector.load %arg7[%c0_3, %c0_4] : memref<32x64xf32, #tpu.memory_space<vmem>>, vector<32x16xf32>
    tpu.vector_store %arg7[%c0_3, %c0_4], %3 {strides = array<i32>} : memref<32x64xf32, #tpu.memory_space<vmem>>, vector<32x16xf32>,
    %5 = vector.extract_strided_slice %0 {offsets = [0, 1, 0, 0], sizes = [2, 1, 16, 16], strides = [1, 1, 1, 1]} : vector<2x4x16x16xf32> to vector<2x1x16x16xf32>
    %6 = vector.shape_cast %5 : vector<2x1x16x16xf32> to vector<2x16x16xf32>
    %7 = vector.shape_cast %6 : vector<2x16x16xf32> to vector<32x16xf32>
    %c0_5 = arith.constant 0 : index
    %c16 = arith.constant 16 : index
    %8 = vector.load %arg7[%c0_5, %c16] : memref<32x64xf32, #tpu.memory_space<vmem>>, vector<32x16xf32>
    tpu.vector_store %arg7[%c0_5, %c16], %7 {strides = array<i32>} : memref<32x64xf32, #tpu.memory_space<vmem>>, vector<32x16xf32>,
    %9 = vector.extract_strided_slice %0 {offsets = [0, 2, 0, 0], sizes = [2, 1, 16, 16], strides = [1, 1, 1, 1]} : vector<2x4x16x16xf32> to vector<2x1x16x16xf32>
    %10 = vector.shape_cast %9 : vector<2x1x16x16xf32> to vector<2x16x16xf32>
    %11 = vector.shape_cast %10 : vector<2x16x16xf32> to vector<32x16xf32>
    %c0_6 = arith.constant 0 : index
    %c32 = arith.constant 32 : index
    %12 = vector.load %arg7[%c0_6, %c32] : memref<32x64xf32, #tpu.memory_space<vmem>>, vector<32x16xf32>
    tpu.vector_store %arg7[%c0_6, %c32], %11 {strides = array<i32>} : memref<32x64xf32, #tpu.memory_space<vmem>>, vector<32x16xf32>,
    %13 = vector.extract_strided_slice %0 {offsets = [0, 3, 0, 0], sizes = [2, 1, 16, 16], strides = [1, 1, 1, 1]} : vector<2x4x16x16xf32> to vector<2x1x16x16xf32>
    %14 = vector.shape_cast %13 : vector<2x1x16x16xf32> to vector<2x16x16xf32>
    %15 = vector.shape_cast %14 : vector<2x16x16xf32> to vector<32x16xf32>
    %c0_7 = arith.constant 0 : index
    %c48 = arith.constant 48 : index
    %16 = vector.load %arg7[%c0_7, %c48] : memref<32x64xf32, #tpu.memory_space<vmem>>, vector<32x16xf32>
    tpu.vector_store %arg7[%c0_7, %c48], %15 {strides = array<i32>} : memref<32x64xf32, #tpu.memory_space<vmem>>, vector<32x16xf32>,
    %17 = tpu.iota {dimensions = array<i32: 0>} : vector<32x32xi32>
    %18 = tpu.iota {dimensions = array<i32: 1>} : vector<32x32xi32>
    %c1_i32 = arith.constant 1 : i32
    %19 = vector.broadcast %c1_i32 : i32 to vector<32x32xi32>
    %20 = arith.subi %17, %19 : vector<32x32xi32>
    %21 = arith.cmpi eq, %18, %20 : vector<32x32xi32>
    %c16_i32 = arith.constant 16 : i32
    %c0_i32 = arith.constant 0 : i32
    %22 = arith.cmpi eq, %c16_i32, %c0_i32 : i32
    %c1_i32_8 = arith.constant 1 : i32
    %23 = arith.select %22, %c1_i32_8, %c16_i32 : i32
    %24 = vector.broadcast %23 : i32 to vector<32x32xi32>
    %25 = arith.remsi %17, %24 : vector<32x32xi32>
    %c0_i32_9 = arith.constant 0 : i32
    %26 = vector.broadcast %c0_i32_9 : i32 to vector<32x32xi32>
    %27 = arith.cmpi ne, %25, %26 : vector<32x32xi32>
    %c0_i32_10 = arith.constant 0 : i32
    %28 = vector.broadcast %c0_i32_10 : i32 to vector<32x32xi32>
    %29 = arith.cmpi slt, %25, %28 : vector<32x32xi32>
    %c0_i32_11 = arith.constant 0 : i32
    %30 = arith.cmpi slt, %23, %c0_i32_11 : i32
    %31 = vector.broadcast %30 : i1 to vector<32x32xi1>
    %32 = vector.broadcast %31 : vector<32x32xi1> to vector<32x32xi1>
    %33 = arith.xori %29, %32 : vector<32x32xi1>
    %34 = arith.andi %33, %27 : vector<32x32xi1>
    %35 = vector.broadcast %23 : i32 to vector<32x32xi32>
    %36 = arith.addi %25, %35 : vector<32x32xi32>
    %37 = arith.select %34, %36, %25 : vector<32x32xi1>, vector<32x32xi32>
    %c0_i32_12 = arith.constant 0 : i32
    %38 = vector.broadcast %c0_i32_12 : i32 to vector<32x32xi32>
    %39 = arith.cmpi ne, %37, %38 : vector<32x32xi32>
    %40 = arith.andi %21, %39 : vector<32x32xi1>
    %41 = arith.extui %40 : vector<32x32xi1> to vector<32x32xi32>
    %42 = arith.sitofp %41 : vector<32x32xi32> to vector<32x32xf32>
    %c1_i32_13 = arith.constant 1 : i32
    %43 = vector.broadcast %c1_i32_13 : i32 to vector<32x32xi32>
    %44 = arith.addi %17, %43 : vector<32x32xi32>
    %45 = arith.cmpi eq, %18, %44 : vector<32x32xi32>
    %c16_i32_14 = arith.constant 16 : i32
    %c0_i32_15 = arith.constant 0 : i32
    %46 = arith.cmpi eq, %c16_i32_14, %c0_i32_15 : i32
    %c1_i32_16 = arith.constant 1 : i32
    %47 = arith.select %46, %c1_i32_16, %c16_i32_14 : i32
    %48 = vector.broadcast %47 : i32 to vector<32x32xi32>
    %49 = arith.remsi %17, %48 : vector<32x32xi32>
    %c0_i32_17 = arith.constant 0 : i32
    %50 = vector.broadcast %c0_i32_17 : i32 to vector<32x32xi32>
    %51 = arith.cmpi ne, %49, %50 : vector<32x32xi32>
    %c0_i32_18 = arith.constant 0 : i32
    %52 = vector.broadcast %c0_i32_18 : i32 to vector<32x32xi32>
    %53 = arith.cmpi slt, %49, %52 : vector<32x32xi32>
    %c0_i32_19 = arith.constant 0 : i32
    %54 = arith.cmpi slt, %47, %c0_i32_19 : i32
    %55 = vector.broadcast %54 : i1 to vector<32x32xi1>
    %56 = vector.broadcast %55 : vector<32x32xi1> to vector<32x32xi1>
    %57 = arith.xori %53, %56 : vector<32x32xi1>
    %58 = arith.andi %57, %51 : vector<32x32xi1>
    %59 = vector.broadcast %47 : i32 to vector<32x32xi32>
    %60 = arith.addi %49, %59 : vector<32x32xi32>
    %61 = arith.select %58, %60, %49 : vector<32x32xi1>, vector<32x32xi32>
    %c15_i32 = arith.constant 15 : i32
    %62 = vector.broadcast %c15_i32 : i32 to vector<32x32xi32>
    %63 = arith.cmpi ne, %61, %62 : vector<32x32xi32>
    %64 = arith.andi %45, %63 : vector<32x32xi1>
    %65 = arith.extui %64 : vector<32x32xi1> to vector<32x32xi32>
    %66 = arith.sitofp %65 : vector<32x32xi32> to vector<32x32xf32>
    %c0_20 = arith.constant 0 : index
    %c0_21 = arith.constant 0 : index
    %67 = vector.load %arg7[%c0_20, %c0_21] : memref<32x64xf32, #tpu.memory_space<vmem>>, vector<32x64xf32>
    %68 = arith.truncf %67 : vector<32x64xf32> to vector<32x64xbf16>
    %c0_22 = arith.constant 0 : index
    %c0_23 = arith.constant 0 : index
    %c0_24 = arith.constant 0 : index
    %69 = vector.load %arg2[%c0_22, %c0_23, %c0_24] : memref<3x64x128xbf16, #tpu.memory_space<vmem>>, vector<1x64x128xbf16>
    %70 = vector.shape_cast %69 : vector<1x64x128xbf16> to vector<64x128xbf16>
    %cst = arith.constant dense<0.000000e+00> : vector<32x128xf32>
    %71 = tpu.matmul %68, %70, %cst {dimension_numbers = #tpu.dot_dimension_numbers<[1], [0], [0], [1], [0, 0, 1, 1], [], []>} : vector<32x64xbf16>, vector<64x128xbf16>, vector<32x128xf32> -> vector<32x128xf32>
    %c1 = arith.constant 1 : index
    %c0_25 = arith.constant 0 : index
    %c0_26 = arith.constant 0 : index
    %72 = vector.load %arg2[%c1, %c0_25, %c0_26] : memref<3x64x128xbf16, #tpu.memory_space<vmem>>, vector<1x64x128xbf16>
    %73 = vector.shape_cast %72 : vector<1x64x128xbf16> to vector<64x128xbf16>
    %cst_27 = arith.constant dense<0.000000e+00> : vector<32x128xf32>
    %74 = tpu.matmul %68, %73, %cst_27 {dimension_numbers = #tpu.dot_dimension_numbers<[1], [0], [0], [1], [0, 0, 1, 1], [], []>} : vector<32x64xbf16>, vector<64x128xbf16>, vector<32x128xf32> -> vector<32x128xf32>
    %c2 = arith.constant 2 : index
    %c0_28 = arith.constant 0 : index
    %c0_29 = arith.constant 0 : index
    %75 = vector.load %arg2[%c2, %c0_28, %c0_29] : memref<3x64x128xbf16, #tpu.memory_space<vmem>>, vector<1x64x128xbf16>
    %76 = vector.shape_cast %75 : vector<1x64x128xbf16> to vector<64x128xbf16>
    %cst_30 = arith.constant dense<0.000000e+00> : vector<32x128xf32>
    %77 = tpu.matmul %68, %76, %cst_30 {dimension_numbers = #tpu.dot_dimension_numbers<[1], [0], [0], [1], [0, 0, 1, 1], [], []>} : vector<32x64xbf16>, vector<64x128xbf16>, vector<32x128xf32> -> vector<32x128xf32>
    %cst_31 = arith.constant dense<0.000000e+00> : vector<32x128xf32>
    %78 = tpu.matmul %42, %71, %cst_31 {dimension_numbers = #tpu.dot_dimension_numbers<[1], [0], [0], [1], [0, 0, 1, 1], [], []>} : vector<32x32xf32>, vector<32x128xf32>, vector<32x128xf32> -> vector<32x128xf32>
    %79 = arith.addf %74, %78 : vector<32x128xf32>
    %cst_32 = arith.constant dense<0.000000e+00> : vector<32x128xf32>
    %80 = tpu.matmul %66, %77, %cst_32 {dimension_numbers = #tpu.dot_dimension_numbers<[1], [0], [0], [1], [0, 0, 1, 1], [], []>} : vector<32x32xf32>, vector<32x128xf32>, vector<32x128xf32> -> vector<32x128xf32>
    %81 = arith.addf %79, %80 : vector<32x128xf32>
    %c0_33 = arith.constant 0 : index
    %c0_34 = arith.constant 0 : index
    %82 = vector.load %arg3[%c0_33, %c0_34] : memref<1x128xf32, #tpu.memory_space<vmem>>, vector<1x128xf32>
    %83 = vector.broadcast %82 : vector<1x128xf32> to vector<32x128xf32>
    %84 = arith.addf %81, %83 : vector<32x128xf32>
    %cst_35 = arith.constant 0.000000e+00 : f32
    %85 = vector.broadcast %cst_35 : f32 to vector<32x128xf32>
    %86 = arith.cmpf oge, %84, %85 : vector<32x128xf32>
    %cst_36 = arith.constant 0.00999999977 : f32
    %87 = vector.broadcast %cst_36 : f32 to vector<32x128xf32>
    %88 = arith.mulf %87, %84 : vector<32x128xf32>
    %89 = arith.select %86, %84, %88 : vector<32x128xi1>, vector<32x128xf32>
    %90 = arith.truncf %89 : vector<32x128xf32> to vector<32x128xbf16>
    %c0_37 = arith.constant 0 : index
    %c0_38 = arith.constant 0 : index
    %c0_39 = arith.constant 0 : index
    %91 = vector.load %arg4[%c0_37, %c0_38, %c0_39] : memref<3x128x128xbf16, #tpu.memory_space<vmem>>, vector<1x128x128xbf16>
    %92 = vector.shape_cast %91 : vector<1x128x128xbf16> to vector<128x128xbf16>
    %cst_40 = arith.constant dense<0.000000e+00> : vector<32x128xf32>
    %93 = tpu.matmul %90, %92, %cst_40 {dimension_numbers = #tpu.dot_dimension_numbers<[1], [0], [0], [1], [0, 0, 1, 1], [], []>} : vector<32x128xbf16>, vector<128x128xbf16>, vector<32x128xf32> -> vector<32x128xf32>
    %c1_41 = arith.constant 1 : index
    %c0_42 = arith.constant 0 : index
    %c0_43 = arith.constant 0 : index
    %94 = vector.load %arg4[%c1_41, %c0_42, %c0_43] : memref<3x128x128xbf16, #tpu.memory_space<vmem>>, vector<1x128x128xbf16>
    %95 = vector.shape_cast %94 : vector<1x128x128xbf16> to vector<128x128xbf16>
    %cst_44 = arith.constant dense<0.000000e+00> : vector<32x128xf32>
    %96 = tpu.matmul %90, %95, %cst_44 {dimension_numbers = #tpu.dot_dimension_numbers<[1], [0], [0], [1], [0, 0, 1, 1], [], []>} : vector<32x128xbf16>, vector<128x128xbf16>, vector<32x128xf32> -> vector<32x128xf32>
    %c2_45 = arith.constant 2 : index
    %c0_46 = arith.constant 0 : index
    %c0_47 = arith.constant 0 : index
    %97 = vector.load %arg4[%c2_45, %c0_46, %c0_47] : memref<3x128x128xbf16, #tpu.memory_space<vmem>>, vector<1x128x128xbf16>
    %98 = vector.shape_cast %97 : vector<1x128x128xbf16> to vector<128x128xbf16>
    %cst_48 = arith.constant dense<0.000000e+00> : vector<32x128xf32>
    %99 = tpu.matmul %90, %98, %cst_48 {dimension_numbers = #tpu.dot_dimension_numbers<[1], [0], [0], [1], [0, 0, 1, 1], [], []>} : vector<32x128xbf16>, vector<128x128xbf16>, vector<32x128xf32> -> vector<32x128xf32>
    %cst_49 = arith.constant dense<0.000000e+00> : vector<32x128xf32>
    %100 = tpu.matmul %42, %93, %cst_49 {dimension_numbers = #tpu.dot_dimension_numbers<[1], [0], [0], [1], [0, 0, 1, 1], [], []>} : vector<32x32xf32>, vector<32x128xf32>, vector<32x128xf32> -> vector<32x128xf32>
    %101 = arith.addf %96, %100 : vector<32x128xf32>
    %cst_50 = arith.constant dense<0.000000e+00> : vector<32x128xf32>
    %102 = tpu.matmul %66, %99, %cst_50 {dimension_numbers = #tpu.dot_dimension_numbers<[1], [0], [0], [1], [0, 0, 1, 1], [], []>} : vector<32x32xf32>, vector<32x128xf32>, vector<32x128xf32> -> vector<32x128xf32>
    %103 = arith.addf %101, %102 : vector<32x128xf32>
    %c0_51 = arith.constant 0 : index
    %c0_52 = arith.constant 0 : index
    %104 = vector.load %arg5[%c0_51, %c0_52] : memref<1x128xf32, #tpu.memory_space<vmem>>, vector<1x128xf32>
    %105 = vector.broadcast %104 : vector<1x128xf32> to vector<32x128xf32>
    %106 = arith.addf %103, %105 : vector<32x128xf32>
    %cst_53 = arith.constant 0.000000e+00 : f32
    %107 = vector.broadcast %cst_53 : f32 to vector<32x128xf32>
    %108 = arith.cmpf oge, %106, %107 : vector<32x128xf32>
    %cst_54 = arith.constant 0.00999999977 : f32
    %109 = vector.broadcast %cst_54 : f32 to vector<32x128xf32>
    %110 = arith.mulf %109, %106 : vector<32x128xf32>
    %111 = arith.select %108, %106, %110 : vector<32x128xi1>, vector<32x128xf32>
    %112 = vector.extract_strided_slice %111 {offsets = [0, 0], sizes = [32, 16], strides = [1, 1]} : vector<32x128xf32> to vector<32x16xf32>
    %113 = vector.shape_cast %112 : vector<32x16xf32> to vector<2x16x16xf32>
    %c0_55 = arith.constant 0 : index
    %c0_56 = arith.constant 0 : index
    %c0_57 = arith.constant 0 : index
    %c0_58 = arith.constant 0 : index
    %114 = vector.load %arg6[%c0_55, %c0_56, %c0_57, %c0_58] : memref<2x8x16x16xf32, #tpu.memory_space<vmem>>, vector<2x1x16x16xf32>
    %115 = vector.shape_cast %114 : vector<2x1x16x16xf32> to vector<2x16x16xf32>
    %116 = vector.shape_cast %113 : vector<2x16x16xf32> to vector<2x1x16x16xf32>
    tpu.vector_store %arg6[%c0_55, %c0_56, %c0_57, %c0_58], %116 {strides = array<i32>} : memref<2x8x16x16xf32, #tpu.memory_space<vmem>>, vector<2x1x16x16xf32>,
    %117 = vector.extract_strided_slice %111 {offsets = [0, 16], sizes = [32, 16], strides = [1, 1]} : vector<32x128xf32> to vector<32x16xf32>
    %118 = vector.shape_cast %117 : vector<32x16xf32> to vector<2x16x16xf32>
    %c0_59 = arith.constant 0 : index
    %c1_60 = arith.constant 1 : index
    %c0_61 = arith.constant 0 : index
    %c0_62 = arith.constant 0 : index
    %119 = vector.load %arg6[%c0_59, %c1_60, %c0_61, %c0_62] : memref<2x8x16x16xf32, #tpu.memory_space<vmem>>, vector<2x1x16x16xf32>
    %120 = vector.shape_cast %119 : vector<2x1x16x16xf32> to vector<2x16x16xf32>
    %121 = vector.shape_cast %118 : vector<2x16x16xf32> to vector<2x1x16x16xf32>
    tpu.vector_store %arg6[%c0_59, %c1_60, %c0_61, %c0_62], %121 {strides = array<i32>} : memref<2x8x16x16xf32, #tpu.memory_space<vmem>>, vector<2x1x16x16xf32>,
    %122 = vector.extract_strided_slice %111 {offsets = [0, 32], sizes = [32, 16], strides = [1, 1]} : vector<32x128xf32> to vector<32x16xf32>
    %123 = vector.shape_cast %122 : vector<32x16xf32> to vector<2x16x16xf32>
    %c0_63 = arith.constant 0 : index
    %c2_64 = arith.constant 2 : index
    %c0_65 = arith.constant 0 : index
    %c0_66 = arith.constant 0 : index
    %124 = vector.load %arg6[%c0_63, %c2_64, %c0_65, %c0_66] : memref<2x8x16x16xf32, #tpu.memory_space<vmem>>, vector<2x1x16x16xf32>
    %125 = vector.shape_cast %124 : vector<2x1x16x16xf32> to vector<2x16x16xf32>
    %126 = vector.shape_cast %123 : vector<2x16x16xf32> to vector<2x1x16x16xf32>
    tpu.vector_store %arg6[%c0_63, %c2_64, %c0_65, %c0_66], %126 {strides = array<i32>} : memref<2x8x16x16xf32, #tpu.memory_space<vmem>>, vector<2x1x16x16xf32>,
    %127 = vector.extract_strided_slice %111 {offsets = [0, 48], sizes = [32, 16], strides = [1, 1]} : vector<32x128xf32> to vector<32x16xf32>
    %128 = vector.shape_cast %127 : vector<32x16xf32> to vector<2x16x16xf32>
    %c0_67 = arith.constant 0 : index
    %c3 = arith.constant 3 : index
    %c0_68 = arith.constant 0 : index
    %c0_69 = arith.constant 0 : index
    %129 = vector.load %arg6[%c0_67, %c3, %c0_68, %c0_69] : memref<2x8x16x16xf32, #tpu.memory_space<vmem>>, vector<2x1x16x16xf32>
    %130 = vector.shape_cast %129 : vector<2x1x16x16xf32> to vector<2x16x16xf32>
    %131 = vector.shape_cast %128 : vector<2x16x16xf32> to vector<2x1x16x16xf32>
    tpu.vector_store %arg6[%c0_67, %c3, %c0_68, %c0_69], %131 {strides = array<i32>} : memref<2x8x16x16xf32, #tpu.memory_space<vmem>>, vector<2x1x16x16xf32>,
    %132 = vector.extract_strided_slice %111 {offsets = [0, 64], sizes = [32, 16], strides = [1, 1]} : vector<32x128xf32> to vector<32x16xf32>
    %133 = vector.shape_cast %132 : vector<32x16xf32> to vector<2x16x16xf32>
    %c0_70 = arith.constant 0 : index
    %c4 = arith.constant 4 : index
    %c0_71 = arith.constant 0 : index
    %c0_72 = arith.constant 0 : index
    %134 = vector.load %arg6[%c0_70, %c4, %c0_71, %c0_72] : memref<2x8x16x16xf32, #tpu.memory_space<vmem>>, vector<2x1x16x16xf32>
    %135 = vector.shape_cast %134 : vector<2x1x16x16xf32> to vector<2x16x16xf32>
    %136 = vector.shape_cast %133 : vector<2x16x16xf32> to vector<2x1x16x16xf32>
    tpu.vector_store %arg6[%c0_70, %c4, %c0_71, %c0_72], %136 {strides = array<i32>} : memref<2x8x16x16xf32, #tpu.memory_space<vmem>>, vector<2x1x16x16xf32>,
    %137 = vector.extract_strided_slice %111 {offsets = [0, 80], sizes = [32, 16], strides = [1, 1]} : vector<32x128xf32> to vector<32x16xf32>
    %138 = vector.shape_cast %137 : vector<32x16xf32> to vector<2x16x16xf32>
    %c0_73 = arith.constant 0 : index
    %c5 = arith.constant 5 : index
    %c0_74 = arith.constant 0 : index
    %c0_75 = arith.constant 0 : index
    %139 = vector.load %arg6[%c0_73, %c5, %c0_74, %c0_75] : memref<2x8x16x16xf32, #tpu.memory_space<vmem>>, vector<2x1x16x16xf32>
    %140 = vector.shape_cast %139 : vector<2x1x16x16xf32> to vector<2x16x16xf32>
    %141 = vector.shape_cast %138 : vector<2x16x16xf32> to vector<2x1x16x16xf32>
    tpu.vector_store %arg6[%c0_73, %c5, %c0_74, %c0_75], %141 {strides = array<i32>} : memref<2x8x16x16xf32, #tpu.memory_space<vmem>>, vector<2x1x16x16xf32>,
    %142 = vector.extract_strided_slice %111 {offsets = [0, 96], sizes = [32, 16], strides = [1, 1]} : vector<32x128xf32> to vector<32x16xf32>
    %143 = vector.shape_cast %142 : vector<32x16xf32> to vector<2x16x16xf32>
    %c0_76 = arith.constant 0 : index
    %c6 = arith.constant 6 : index
    %c0_77 = arith.constant 0 : index
    %c0_78 = arith.constant 0 : index
    %144 = vector.load %arg6[%c0_76, %c6, %c0_77, %c0_78] : memref<2x8x16x16xf32, #tpu.memory_space<vmem>>, vector<2x1x16x16xf32>
    %145 = vector.shape_cast %144 : vector<2x1x16x16xf32> to vector<2x16x16xf32>
    %146 = vector.shape_cast %143 : vector<2x16x16xf32> to vector<2x1x16x16xf32>
    tpu.vector_store %arg6[%c0_76, %c6, %c0_77, %c0_78], %146 {strides = array<i32>} : memref<2x8x16x16xf32, #tpu.memory_space<vmem>>, vector<2x1x16x16xf32>,
    %147 = vector.extract_strided_slice %111 {offsets = [0, 112], sizes = [32, 16], strides = [1, 1]} : vector<32x128xf32> to vector<32x16xf32>
    %148 = vector.shape_cast %147 : vector<32x16xf32> to vector<2x16x16xf32>
    %c0_79 = arith.constant 0 : index
    %c7 = arith.constant 7 : index
    %c0_80 = arith.constant 0 : index
    %c0_81 = arith.constant 0 : index
    %149 = vector.load %arg6[%c0_79, %c7, %c0_80, %c0_81] : memref<2x8x16x16xf32, #tpu.memory_space<vmem>>, vector<2x1x16x16xf32>
    %150 = vector.shape_cast %149 : vector<2x1x16x16xf32> to vector<2x16x16xf32>
    %151 = vector.shape_cast %148 : vector<2x16x16xf32> to vector<2x1x16x16xf32>
    tpu.vector_store %arg6[%c0_79, %c7, %c0_80, %c0_81], %151 {strides = array<i32>} : memref<2x8x16x16xf32, #tpu.memory_space<vmem>>, vector<2x1x16x16xf32>,
    return
  }
  func.func @transform_0(%arg0: i32) -> (i32, i32, i32, i32) {
    %c0_i32 = arith.constant 0 : i32
    %c0_i32_0 = arith.constant 0 : i32
    %c0_i32_1 = arith.constant 0 : i32
    %c0_i32_2 = arith.constant 0 : i32
    return %arg0, %c0_i32, %c0_i32_0, %c0_i32_1 : i32, i32, i32, i32
  }
  func.func @transform_1(%arg0: i32) -> (i32, i32, i32) {
    %c0_i32 = arith.constant 0 : i32
    %c0_i32_0 = arith.constant 0 : i32
    %c0_i32_1 = arith.constant 0 : i32
    %c0_i32_2 = arith.constant 0 : i32
    return %c0_i32, %c0_i32_0, %c0_i32_1 : i32, i32, i32
  }
  func.func @transform_2(%arg0: i32) -> (i32, i32) {
    %c0_i32 = arith.constant 0 : i32
    %c0_i32_0 = arith.constant 0 : i32
    %c0_i32_1 = arith.constant 0 : i32
    return %c0_i32, %c0_i32_0 : i32, i32
  }
  func.func @transform_3(%arg0: i32) -> (i32, i32, i32) {
    %c0_i32 = arith.constant 0 : i32
    %c0_i32_0 = arith.constant 0 : i32
    %c0_i32_1 = arith.constant 0 : i32
    %c0_i32_2 = arith.constant 0 : i32
    return %c0_i32, %c0_i32_0, %c0_i32_1 : i32, i32, i32
  }
  func.func @transform_4(%arg0: i32) -> (i32, i32) {
    %c0_i32 = arith.constant 0 : i32
    %c0_i32_0 = arith.constant 0 : i32
    %c0_i32_1 = arith.constant 0 : i32
    return %c0_i32, %c0_i32_0 : i32, i32
  }
  func.func @transform_5(%arg0: i32) -> (i32, i32, i32, i32) {
    %c0_i32 = arith.constant 0 : i32
    %c0_i32_0 = arith.constant 0 : i32
    %c0_i32_1 = arith.constant 0 : i32
    %c0_i32_2 = arith.constant 0 : i32
    return %arg0, %c0_i32, %c0_i32_0, %c0_i32_1 : i32, i32, i32, i32
  }
}

</mosaic_0001>

<llo_original>
// kernel: conv_block_forward.1
$region0: #{conv_block_forward.1}
  #allocation0 [shape = 'u32[]', space=smem, size = 0x4, offset = 0x4, fixed_abs, tag = 'smem constant byte address 0x4 - core index']
  #allocation1 [shape = 'u32[144,128]{1,0:T(1,128)}', space=vmem, size = 0x12000, scoped, tag = 'internal scratch']
  #allocation2 [shape = 'f32[32,64]{1,0:T(8,128)}', space=vmem, size = 0x4000, scoped, tag = 'scratch operand']
  %s0 = inlined_call_operand.hbm [shape: f32[2,4,16,16], index: 0, kind: input, shape index: {}]
  %s1 = inlined_call_operand.hbm [shape: bf16[3,64,128], index: 1, kind: input, shape index: {}]
  %s2 = inlined_call_operand.vmem [shape: f32[1,128], index: 2, kind: input, shape index: {}]
  %s3 = inlined_call_operand.hbm [shape: bf16[3,128,128], index: 3, kind: input, shape index: {}]
  %s4 = inlined_call_operand.vmem [shape: f32[1,128], index: 4, kind: input, shape index: {}]
  %s5 = inlined_call_operand.hbm [shape: f32[2,8,16,16], index: 5, kind: output, shape index: {}]
  %s6 = sld [smem:[#allocation0]]
  $region42: #{conv_block_forward.1} parent=0
    _
  %s8 = ssub.s32 1, %s6
  %s9 = scalar_select 0, %s8, %s6
  $region1: #{conv_block_forward.1} parent=0
    #allocation3 [shape = 'u8[65536]{0}', space=vmem, size = 0x10000, scoped, tag = 'input window, operand 0, single buffered']
    #allocation4 [shape = 's32[1]{0}', space=sflag, size = 0x4, scoped, tag = 'scoped memory for conv_block_forward.1']
    #allocation5 [shape = 's32[1]{0}', space=sflag, size = 0x4, scoped, tag = 'scoped memory for conv_block_forward.1']
    #allocation6 [shape = 'u8[49152]{0}', space=vmem, size = 0xc000, scoped, tag = 'input window, operand 1, single buffered']
    #allocation7 [shape = 's32[1]{0}', space=sflag, size = 0x4, scoped, tag = 'scoped memory for conv_block_forward.1']
    #allocation8 [shape = 'u8[98304]{0}', space=vmem, size = 0x18000, scoped, tag = 'input window, operand 3, single buffered']
    #allocation9 [shape = 'u8[131072]{0}', space=vmem, size = 0x20000, scoped, tag = 'output window, operand 0, single buffered']
    %10 = vsyncpa [#allocation4], 0
    %11 = vsyncpa [#allocation7], 0
    %12 = vsyncpa [#allocation5], 0
    // Predicated region
    $region2: #{conv_block_forward.1} parent=1 // pred_check
      _
    $region3: #{conv_block_forward.1} parent=1 // pred_check_branch
      %14 = sbr.rel (0) target = $region5
    $region4: #{conv_block_forward.1} parent=1 // pred_region
      %s16 = ssub.s32 2048, 2048
      %17 = vsyncadd [#allocation4], %s16
      %s18 = sshll.u32 [#allocation3], 4
      %s19 = int_to_ptr.vmem [resolvable:$true] %s18
      %24 = dma.hbm_to_vmem [thread:$0]  %s0, 2048, %s19, [#allocation4], 128, 128, 8
    $region5: #{conv_block_forward.1} parent=1 // pred_fallthru
      _
    // Predicated region
    $region6: #{conv_block_forward.1} parent=1 // pred_check
      _
    $region7: #{conv_block_forward.1} parent=1 // pred_check_branch
      %26 = sbr.rel (0) target = $region9
    $region8: #{conv_block_forward.1} parent=1 // pred_region
      %s28 = ssub.s32 1536, 1536
      %29 = vsyncadd [#allocation7], %s28
      %s30 = sshll.u32 [#allocation6], 4
      %s31 = int_to_ptr.vmem [resolvable:$true] %s30
      %36 = dma.hbm_to_vmem [thread:$0]  %s1, 1536, %s31, [#allocation7], 64, 64, 4
    $region9: #{conv_block_forward.1} parent=1 // pred_fallthru
      _
    // Predicated region
    $region10: #{conv_block_forward.1} parent=1 // pred_check
      _
    $region11: #{conv_block_forward.1} parent=1 // pred_check_branch
      %38 = sbr.rel (0) target = $region13
    $region12: #{conv_block_forward.1} parent=1 // pred_region
      _
    $region13: #{conv_block_forward.1} parent=1 // pred_fallthru
      _
    // Predicated region
    $region14: #{conv_block_forward.1} parent=1 // pred_check
      _
    $region15: #{conv_block_forward.1} parent=1 // pred_check_branch
      %40 = sbr.rel (0) target = $region17
    $region16: #{conv_block_forward.1} parent=1 // pred_region
      %s42 = ssub.s32 3072, 3072
      %43 = vsyncadd [#allocation7], %s42
      %s44 = sshll.u32 [#allocation8], 4
      %s45 = int_to_ptr.vmem [resolvable:$true] %s44
      %50 = dma.hbm_to_vmem [thread:$0]  %s3, 3072, %s45, [#allocation7], 64, 64, 4
    $region17: #{conv_block_forward.1} parent=1 // pred_fallthru
      _
    // Predicated region
    $region18: #{conv_block_forward.1} parent=1 // pred_check
      _
    $region19: #{conv_block_forward.1} parent=1 // pred_check_branch
      %52 = sbr.rel (0) target = $region21
    $region20: #{conv_block_forward.1} parent=1 // pred_region
      _
    $region21: #{conv_block_forward.1} parent=1 // pred_fallthru
      _
    // Predicated region
    $region22: #{conv_block_forward.1} parent=1 // pred_check
      _
    $region23: #{conv_block_forward.1} parent=1 // pred_check_branch
      %54 = sbr.rel (0) target = $region25
    $region24: #{conv_block_forward.1} parent=1 // pred_region
      %55 = dma.done [#allocation4], 2048
    $region25: #{conv_block_forward.1} parent=1 // pred_fallthru
      _
    // Predicated region
    $region26: #{conv_block_forward.1} parent=1 // pred_check
      _
    $region27: #{conv_block_forward.1} parent=1 // pred_check_branch
      %57 = sbr.rel (0) target = $region29
    $region28: #{conv_block_forward.1} parent=1 // pred_region
      %58 = dma.done [#allocation7], 1536
    $region29: #{conv_block_forward.1} parent=1 // pred_fallthru
      _
    // Predicated region
    $region30: #{conv_block_forward.1} parent=1 // pred_check
      _
    $region31: #{conv_block_forward.1} parent=1 // pred_check_branch
      %60 = sbr.rel (0) target = $region33
    $region32: #{conv_block_forward.1} parent=1 // pred_region
      %61 = dma.done [#allocation7], 3072
    $region33: #{conv_block_forward.1} parent=1 // pred_fallthru
      _
    %v63 = vld [vmem:[#allocation3] sm:$0xff]
    %v64 = vld [vmem:[#allocation3 + $0x8] sm:$0xff]
    %v65 = vld [vmem:[#allocation3 + $0x10] sm:$0xff]
    %v66 = vld [vmem:[#allocation3 + $0x18] sm:$0xff]
    %v67 = vld [vmem:[#allocation3 + $0x20] sm:$0xff]
    %v68 = vld [vmem:[#allocation3 + $0x28] sm:$0xff]
    %v69 = vld [vmem:[#allocation3 + $0x30] sm:$0xff]
    %v70 = vld [vmem:[#allocation3 + $0x38] sm:$0xff]
    %v71 = vld [vmem:[#allocation3 + $0x40] sm:$0xff]
    %v72 = vld [vmem:[#allocation3 + $0x48] sm:$0xff]
    %v73 = vld [vmem:[#allocation3 + $0x50] sm:$0xff]
    %v74 = vld [vmem:[#allocation3 + $0x58] sm:$0xff]
    %v75 = vld [vmem:[#allocation3 + $0x60] sm:$0xff]
    %v76 = vld [vmem:[#allocation3 + $0x68] sm:$0xff]
    %v77 = vld [vmem:[#allocation3 + $0x70] sm:$0xff]
    %v78 = vld [vmem:[#allocation3 + $0x78] sm:$0xff]
    %vm79 = vcmask 130048
    %80 = vst.msk [vmem:[#allocation2] sm:$0xff] %vm79, %v63
    %81 = vst.msk [vmem:[#allocation2 + $0x8] sm:$0xff] %vm79, %v64
    %82 = vst.msk [vmem:[#allocation2 + $0x10] sm:$0xff] %vm79, %v71
    %83 = vst.msk [vmem:[#allocation2 + $0x18] sm:$0xff] %vm79, %v72
    %88 = vrot.lane.b32.xlu0 %v65, 16
    %v89 = vpop.permute.xlu0 %88
    %90 = vrot.lane.b32.xlu0 %v66, 16
    %v91 = vpop.permute.xlu0 %90
    %92 = vrot.lane.b32.xlu0 %v73, 16
    %v93 = vpop.permute.xlu0 %92
    %94 = vrot.lane.b32.xlu0 %v74, 16
    %v95 = vpop.permute.xlu0 %94
    %vm100 = vcmask 261248
    %101 = vst.msk [vmem:[#allocation2] sm:$0xff] %vm100, %v89
    %102 = vst.msk [vmem:[#allocation2 + $0x8] sm:$0xff] %vm100, %v91
    %103 = vst.msk [vmem:[#allocation2 + $0x10] sm:$0xff] %vm100, %v93
    %104 = vst.msk [vmem:[#allocation2 + $0x18] sm:$0xff] %vm100, %v95
    %109 = vrot.lane.b32.xlu0 %v67, 32
    %v110 = vpop.permute.xlu0 %109
    %111 = vrot.lane.b32.xlu0 %v68, 32
    %v112 = vpop.permute.xlu0 %111
    %113 = vrot.lane.b32.xlu0 %v75, 32
    %v114 = vpop.permute.xlu0 %113
    %115 = vrot.lane.b32.xlu0 %v76, 32
    %v116 = vpop.permute.xlu0 %115
    %vm121 = vcmask 392448
    %122 = vst.msk [vmem:[#allocation2] sm:$0xff] %vm121, %v110
    %123 = vst.msk [vmem:[#allocation2 + $0x8] sm:$0xff] %vm121, %v112
    %124 = vst.msk [vmem:[#allocation2 + $0x10] sm:$0xff] %vm121, %v114
    %125 = vst.msk [vmem:[#allocation2 + $0x18] sm:$0xff] %vm121, %v116
    %130 = vrot.lane.b32.xlu0 %v69, 48
    %v131 = vpop.permute.xlu0 %130
    %132 = vrot.lane.b32.xlu0 %v70, 48
    %v133 = vpop.permute.xlu0 %132
    %134 = vrot.lane.b32.xlu0 %v77, 48
    %v135 = vpop.permute.xlu0 %134
    %136 = vrot.lane.b32.xlu0 %v78, 48
    %v137 = vpop.permute.xlu0 %136
    %vm142 = vcmask 523648
    %143 = vst.msk [vmem:[#allocation2] sm:$0xff] %vm142, %v131
    %144 = vst.msk [vmem:[#allocation2 + $0x8] sm:$0xff] %vm142, %v133
    %145 = vst.msk [vmem:[#allocation2 + $0x10] sm:$0xff] %vm142, %v135
    %146 = vst.msk [vmem:[#allocation2 + $0x18] sm:$0xff] %vm142, %v137
    %v147 = vlaneseq
    %v148 = vshrl.u32 %v147, 7
    %v149 = vadd.s32 %v148, 8
    %v150 = vadd.s32 %v148, 16
    %v151 = vadd.s32 %v148, 24
    %v152 = vlaneseq
    %v153 = vand.u32 %v152, 127
    %v154 = vsub.s32 %v148, 1
    %v155 = vsub.s32 %v149, 1
    %v156 = vsub.s32 %v150, 1
    %v157 = vsub.s32 %v151, 1
    %vm158 = vcmp.eq.s32.totalorder %v153, %v154
    %vm159 = vcmp.eq.s32.totalorder %v153, %v155
    %vm160 = vcmp.eq.s32.totalorder %v153, %v156
    %vm161 = vcmp.eq.s32.totalorder %v153, %v157
    %vm162 = vcmp.lt.s32.totalorder %v148, 0
    %v163 = vsub.s32 0, %v148
    %v164 = vsel %vm162, %v163, %v148
    %v165 = vshrl.u32 %v164, 4
    %v166 = vand.u32 %v164, 15
    %v167 = vsub.s32 0, %v166
    %v168 = vsel %vm162, %v167, %v166
    %vm169 = vcmp.lt.s32.totalorder %v149, 0
    %v170 = vsub.s32 0, %v149
    %v171 = vsel %vm169, %v170, %v149
    %v172 = vshrl.u32 %v171, 4
    %v173 = vand.u32 %v171, 15
    %v174 = vsub.s32 0, %v173
    %v175 = vsel %vm169, %v174, %v173
    %vm176 = vcmp.lt.s32.totalorder %v150, 0
    %v177 = vsub.s32 0, %v150
    %v178 = vsel %vm176, %v177, %v150
    %v179 = vshrl.u32 %v178, 4
    %v180 = vand.u32 %v178, 15
    %v181 = vsub.s32 0, %v180
    %v182 = vsel %vm176, %v181, %v180
    %vm183 = vcmp.lt.s32.totalorder %v151, 0
    %v184 = vsub.s32 0, %v151
    %v185 = vsel %vm183, %v184, %v151
    %v186 = vshrl.u32 %v185, 4
    %v187 = vand.u32 %v185, 15
    %v188 = vsub.s32 0, %v187
    %v189 = vsel %vm183, %v188, %v187
    %vm190 = vcmp.ne.s32.totalorder %v168, 0
    %vm191 = vcmp.ne.s32.totalorder %v175, 0
    %vm192 = vcmp.ne.s32.totalorder %v182, 0
    %vm193 = vcmp.ne.s32.totalorder %v189, 0
    %vm194 = vcmp.lt.s32.totalorder %v168, 0
    %vm195 = vcmp.lt.s32.totalorder %v175, 0
    %vm196 = vcmp.lt.s32.totalorder %v182, 0
    %vm197 = vcmp.lt.s32.totalorder %v189, 0
    %vm198 = vmand %vm194, %vm190
    %vm199 = vmand %vm195, %vm191
    %vm200 = vmand %vm196, %vm192
    %vm201 = vmand %vm197, %vm193
    %v202 = vadd.s32 %v168, 16
    %v203 = vadd.s32 %v175, 16
    %v204 = vadd.s32 %v182, 16
    %v205 = vadd.s32 %v189, 16
    %v206 = vsel %vm198, %v202, %v168
    %v207 = vsel %vm199, %v203, %v175
    %v208 = vsel %vm200, %v204, %v182
    %v209 = vsel %vm201, %v205, %v189
    %vm210 = vcmp.ne.s32.totalorder %v206, 0
    %vm211 = vcmp.ne.s32.totalorder %v207, 0
    %vm212 = vcmp.ne.s32.totalorder %v208, 0
    %vm213 = vcmp.ne.s32.totalorder %v209, 0
    %vm214 = vmand %vm158, %vm210
    %vm215 = vmand %vm159, %vm211
    %vm216 = vmand %vm160, %vm212
    %vm217 = vmand %vm161, %vm213
    %v218 = vsel %vm214, 1, 0
    %v219 = vsel %vm215, 1, 0
    %v220 = vsel %vm216, 1, 0
    %v221 = vsel %vm217, 1, 0
    %v222 = vcvt.s32.f32 %v218
    %v223 = vcvt.s32.f32 %v219
    %v224 = vcvt.s32.f32 %v220
    %v225 = vcvt.s32.f32 %v221
    %v226 = vadd.s32 %v148, 1
    %v227 = vadd.s32 %v149, 1
    %v228 = vadd.s32 %v150, 1
    %v229 = vadd.s32 %v151, 1
    %vm230 = vcmp.eq.s32.totalorder %v153, %v226
    %vm231 = vcmp.eq.s32.totalorder %v153, %v227
    %vm232 = vcmp.eq.s32.totalorder %v153, %v228
    %vm233 = vcmp.eq.s32.totalorder %v153, %v229
    %vm234 = vcmp.ne.s32.totalorder %v206, 15
    %vm235 = vcmp.ne.s32.totalorder %v207, 15
    %vm236 = vcmp.ne.s32.totalorder %v208, 15
    %vm237 = vcmp.ne.s32.totalorder %v209, 15
    %vm238 = vmand %vm230, %vm234
    %vm239 = vmand %vm231, %vm235
    %vm240 = vmand %vm232, %vm236
    %vm241 = vmand %vm233, %vm237
    %v242 = vsel %vm238, 1, 0
    %v243 = vsel %vm239, 1, 0
    %v244 = vsel %vm240, 1, 0
    %v245 = vsel %vm241, 1, 0
    %v246 = vcvt.s32.f32 %v242
    %v247 = vcvt.s32.f32 %v243
    %v248 = vcvt.s32.f32 %v244
    %v249 = vcvt.s32.f32 %v245
    %v250 = vld [vmem:[#allocation2] sm:$0xff]
    %v251 = vld [vmem:[#allocation2 + $0x8] sm:$0xff]
    %v252 = vld [vmem:[#allocation2 + $0x10] sm:$0xff]
    %v253 = vld [vmem:[#allocation2 + $0x18] sm:$0xff]
    %v254 = vpack.c.bf16 %v251, %v250
    %v255 = vpack.c.bf16 %v253, %v252
    %v256 = vld [vmem:[#allocation6] sm:$0xf]
    %v257 = vld [vmem:[#allocation6 + $0x4] sm:$0xf]
    %v258 = vld [vmem:[#allocation6 + $0x8] sm:$0xf]
    %v259 = vld [vmem:[#allocation6 + $0xc] sm:$0xf]
    %v260 = vld [vmem:[#allocation6 + $0x10] sm:$0xf]
    %v261 = vld [vmem:[#allocation6 + $0x14] sm:$0xf]
    %v262 = vld [vmem:[#allocation6 + $0x18] sm:$0xf]
    %v263 = vld [vmem:[#allocation6 + $0x1c] sm:$0xf]
    %v272 = vunpack.c.l.b16 %v256
    %v273 = vunpack.c.l.b16 %v257
    %v274 = vunpack.c.l.b16 %v258
    %v275 = vunpack.c.l.b16 %v259
    %v276 = vunpack.c.l.b16 %v260
    %v277 = vunpack.c.l.b16 %v261
    %v278 = vunpack.c.l.b16 %v262
    %v279 = vunpack.c.l.b16 %v263
    %v280 = vpack.c.b16 %v273, %v272
    %v281 = vpack.c.b16 %v275, %v274
    %v282 = vpack.c.b16 %v277, %v276
    %v283 = vpack.c.b16 %v279, %v278
    %vm288 = vcmask 523264
    %v290 = vsel %vm288, %v254, 0
    %v293 = vsel %vm288, %v255, 0
    %295 = vmatprep.subr.bf16.mxu0 0
    %296 = vmatpush1.bf16.msra.mxu0 %v280
    %297 = vmatprep.subr.bf16.mxu0 0
    %298 = vmatpush1.bf16.msra.mxu0 %v281
    %299 = vmatprep.subr.bf16.mxu0 0
    %300 = vmatpush1.bf16.msra.mxu0 %v282
    %301 = vmatprep.subr.bf16.mxu0 0
    %302 = vmatpush1.bf16.msra.mxu0 %v283
    %303 = vmatprep.subr.bf16.mxu0 0
    %304 = vmatpush1.bf16.msra.mxu0 0
    %305 = vmatprep.subr.bf16.mxu0 0
    %306 = vmatpush1.bf16.msra.mxu0 0
    %307 = vmatprep.subr.bf16.mxu0 0
    %308 = vmatpush1.bf16.msra.mxu0 0
    %309 = vmatprep.subr.bf16.mxu0 0
    %310 = vmatpush1.bf16.msra.mxu0 0
    %311 = vmatprep.subr.bf16.mxu0 0
    %312 = vmatpush1.bf16.msra.mxu0 0
    %313 = vmatprep.subr.bf16.mxu0 0
    %314 = vmatpush1.bf16.msra.mxu0 0
    %315 = vmatprep.subr.bf16.mxu0 0
    %316 = vmatpush1.bf16.msra.mxu0 0
    %317 = vmatprep.subr.bf16.mxu0 0
    %318 = vmatpush1.bf16.msra.mxu0 0
    %319 = vmatprep.subr.bf16.mxu0 0
    %320 = vmatpush1.bf16.msra.mxu0 0
    %321 = vmatprep.subr.bf16.mxu0 0
    %322 = vmatpush1.bf16.msra.mxu0 0
    %323 = vmatprep.subr.bf16.mxu0 0
    %324 = vmatpush1.bf16.msra.mxu0 0
    %325 = vmatprep.subr.bf16.mxu0 0
    %326 = vmatpush1.bf16.msra.mxu0 0
    %327 = vmatprep.mubr.bf16.mxu0 0
    %328 = vmatmul.mubr.bf16.gmra.mrb[0].mxu0 %v290
    %v329 = vpop.f32.mrb[0].mxu0
    %v330 = vadd.f32 0.0, %v329
    %v331 = vpop.f32.mrb[0].mxu0
    %v332 = vpop.f32.mrb[0].mxu0
    %v333 = vadd.f32 0.0, %v332
    %v334 = vpop.f32.mrb[0].mxu0
    %335 = vmatprep.mubr.bf16.mxu0 0
    %336 = vmatmul.mubr.bf16.gmra.mrb[0].mxu0 %v293
    %v337 = vpop.f32.mrb[0].mxu0
    %v338 = vadd.f32 0.0, %v337
    %v339 = vpop.f32.mrb[0].mxu0
    %v340 = vpop.f32.mrb[0].mxu0
    %v341 = vadd.f32 0.0, %v340
    %v342 = vpop.f32.mrb[0].mxu0
    %343 = vdwg.mxu0
    %s344 = scalar_lea.vmem [#allocation6], 32
    %v345 = vld [vmem:[%s344] sm:$0xf]
    %v346 = vld [vmem:[%s344 + $0x4] sm:$0xf]
    %v347 = vld [vmem:[%s344 + $0x8] sm:$0xf]
    %v348 = vld [vmem:[%s344 + $0xc] sm:$0xf]
    %v349 = vld [vmem:[%s344 + $0x10] sm:$0xf]
    %v350 = vld [vmem:[%s344 + $0x14] sm:$0xf]
    %v351 = vld [vmem:[%s344 + $0x18] sm:$0xf]
    %v352 = vld [vmem:[%s344 + $0x1c] sm:$0xf]
    %s353 = scalar_lea.vmem [#allocation6], 64
    %v354 = vld [vmem:[%s353] sm:$0xf]
    %v355 = vld [vmem:[%s353 + $0x4] sm:$0xf]
    %v356 = vld [vmem:[%s353 + $0x8] sm:$0xf]
    %v357 = vld [vmem:[%s353 + $0xc] sm:$0xf]
    %v358 = vld [vmem:[%s353 + $0x10] sm:$0xf]
    %v359 = vld [vmem:[%s353 + $0x14] sm:$0xf]
    %v360 = vld [vmem:[%s353 + $0x18] sm:$0xf]
    %v361 = vld [vmem:[%s353 + $0x1c] sm:$0xf]
    %v370 = vunpack.c.l.b16 %v354
    %v371 = vunpack.c.l.b16 %v355
    %v372 = vunpack.c.l.b16 %v356
    %v373 = vunpack.c.l.b16 %v357
    %v374 = vunpack.c.l.b16 %v358
    %v375 = vunpack.c.l.b16 %v359
    %v376 = vunpack.c.l.b16 %v360
    %v377 = vunpack.c.l.b16 %v361
    %v378 = vpack.c.b16 %v371, %v370
    %v379 = vpack.c.b16 %v373, %v372
    %v380 = vpack.c.b16 %v375, %v374
    %v381 = vpack.c.b16 %v377, %v376
    %386 = vmatprep.subr.bf16.mxu0 0
    %387 = vmatpush1.bf16.msra.mxu0 %v378
    %388 = vmatprep.subr.bf16.mxu0 0
    %389 = vmatpush1.bf16.msra.mxu0 %v379
    %390 = vmatprep.subr.bf16.mxu0 0
    %391 = vmatpush1.bf16.msra.mxu0 %v380
    %392 = vmatprep.subr.bf16.mxu0 0
    %393 = vmatpush1.bf16.msra.mxu0 %v381
    %394 = vmatprep.subr.bf16.mxu0 0
    %395 = vmatpush1.bf16.msra.mxu0 0
    %396 = vmatprep.subr.bf16.mxu0 0
    %397 = vmatpush1.bf16.msra.mxu0 0
    %398 = vmatprep.subr.bf16.mxu0 0
    %399 = vmatpush1.bf16.msra.mxu0 0
    %400 = vmatprep.subr.bf16.mxu0 0
    %401 = vmatpush1.bf16.msra.mxu0 0
    %402 = vmatprep.subr.bf16.mxu0 0
    %403 = vmatpush1.bf16.msra.mxu0 0
    %404 = vmatprep.subr.bf16.mxu0 0
    %405 = vmatpush1.bf16.msra.mxu0 0
    %406 = vmatprep.subr.bf16.mxu0 0
    %407 = vmatpush1.bf16.msra.mxu0 0
    %408 = vmatprep.subr.bf16.mxu0 0
    %409 = vmatpush1.bf16.msra.mxu0 0
    %410 = vmatprep.subr.bf16.mxu0 0
    %411 = vmatpush1.bf16.msra.mxu0 0
    %412 = vmatprep.subr.bf16.mxu0 0
    %413 = vmatpush1.bf16.msra.mxu0 0
    %414 = vmatprep.subr.bf16.mxu0 0
    %415 = vmatpush1.bf16.msra.mxu0 0
    %416 = vmatprep.subr.bf16.mxu0 0
    %417 = vmatpush1.bf16.msra.mxu0 0
    %418 = vmatprep.mubr.bf16.mxu0 0
    %419 = vmatmul.mubr.bf16.gmra.mrb[0].mxu0 %v290
    %v420 = vpop.f32.mrb[0].mxu0
    %v421 = vadd.f32 0.0, %v420
    %v422 = vpop.f32.mrb[0].mxu0
    %v423 = vpop.f32.mrb[0].mxu0
    %v424 = vadd.f32 0.0, %v423
    %v425 = vpop.f32.mrb[0].mxu0
    %426 = vmatprep.mubr.bf16.mxu0 0
    %427 = vmatmul.mubr.bf16.gmra.mrb[0].mxu0 %v293
    %v428 = vpop.f32.mrb[0].mxu0
    %v429 = vadd.f32 0.0, %v428
    %v430 = vpop.f32.mrb[0].mxu0
    %v431 = vpop.f32.mrb[0].mxu0
    %v432 = vadd.f32 0.0, %v431
    %v433 = vpop.f32.mrb[0].mxu0
    %434 = vdwg.mxu0
    %vm435 = vcmask 261120
    %v437 = vsel %vm435, %v222, 0
    %v440 = vsel %vm435, %v223, 0
    %v443 = vsel %vm435, %v224, 0
    %v446 = vsel %vm435, %v225, 0
    %448 = vmatprep.subr.mxu0 0.0
    %449 = vmatpush1.msra.mxu0 %v330
    %450 = vmatprep.subr.mxu0 0.0
    %451 = vmatpush1.msra.mxu0 %v333
    %452 = vmatprep.subr.mxu0 0.0
    %453 = vmatpush1.msra.mxu0 %v338
    %454 = vmatprep.subr.mxu0 0.0
    %455 = vmatpush1.msra.mxu0 %v341
    %456 = vmatprep.subr.mxu0 0.0
    %457 = vmatpush1.msra.mxu0 0.0
    %458 = vmatprep.subr.mxu0 0.0
    %459 = vmatpush1.msra.mxu0 0.0
    %460 = vmatprep.subr.mxu0 0.0
    %461 = vmatpush1.msra.mxu0 0.0
    %462 = vmatprep.subr.mxu0 0.0
    %463 = vmatpush1.msra.mxu0 0.0
    %464 = vmatprep.subr.mxu0 0.0
    %465 = vmatpush1.msra.mxu0 0.0
    %466 = vmatprep.subr.mxu0 0.0
    %467 = vmatpush1.msra.mxu0 0.0
    %468 = vmatprep.subr.mxu0 0.0
    %469 = vmatpush1.msra.mxu0 0.0
    %470 = vmatprep.subr.mxu0 0.0
    %471 = vmatpush1.msra.mxu0 0.0
    %472 = vmatprep.subr.mxu0 0.0
    %473 = vmatpush1.msra.mxu0 0.0
    %474 = vmatprep.subr.mxu0 0.0
    %475 = vmatpush1.msra.mxu0 0.0
    %476 = vmatprep.subr.mxu0 0.0
    %477 = vmatpush1.msra.mxu0 0.0
    %478 = vmatprep.subr.mxu0 0.0
    %479 = vmatpush1.msra.mxu0 0.0
    %480 = vmatprep.subr.mxu0 0.0
    %481 = vmatpush1.msra.mxu0 0.0
    %482 = vmatprep.subr.mxu0 0.0
    %483 = vmatpush1.msra.mxu0 0.0
    %484 = vmatprep.subr.mxu0 0.0
    %485 = vmatpush1.msra.mxu0 0.0
    %486 = vmatprep.subr.mxu0 0.0
    %487 = vmatpush1.msra.mxu0 0.0
    %488 = vmatprep.subr.mxu0 0.0
    %489 = vmatpush1.msra.mxu0 0.0
    %490 = vmatprep.subr.mxu0 0.0
    %491 = vmatpush1.msra.mxu0 0.0
    %492 = vmatprep.subr.mxu0 0.0
    %493 = vmatpush1.msra.mxu0 0.0
    %494 = vmatprep.subr.mxu0 0.0
    %495 = vmatpush1.msra.mxu0 0.0
    %496 = vmatprep.subr.mxu0 0.0
    %497 = vmatpush1.msra.mxu0 0.0
    %498 = vmatprep.subr.mxu0 0.0
    %499 = vmatpush1.msra.mxu0 0.0
    %500 = vmatprep.subr.mxu0 0.0
    %501 = vmatpush1.msra.mxu0 0.0
    %502 = vmatprep.subr.mxu0 0.0
    %503 = vmatpush1.msra.mxu0 0.0
    %504 = vmatprep.subr.mxu0 0.0
    %505 = vmatpush1.msra.mxu0 0.0
    %506 = vmatprep.subr.mxu0 0.0
    %507 = vmatpush1.msra.mxu0 0.0
    %508 = vmatprep.subr.mxu0 0.0
    %509 = vmatpush1.msra.mxu0 0.0
    %510 = vmatprep.subr.mxu0 0.0
    %511 = vmatpush1.msra.mxu0 0.0
    %512 = vmatprep.mubr.f32.mxu0 0.0
    %513 = vmatmul.mubr.f32.gmra.mrb[0].mxu0 %v437
    %v514 = vpop.f32.mrb[0].mxu0
    %v515 = vadd.f32 0.0, %v514
    %v516 = vpop.f32.mrb[0].mxu0
    %517 = vmatprep.mubr.f32.mxu0 0.0
    %518 = vmatmul.mubr.f32.gmra.mrb[0].mxu0 %v440
    %v519 = vpop.f32.mrb[0].mxu0
    %v520 = vadd.f32 0.0, %v519
    %v521 = vpop.f32.mrb[0].mxu0
    %522 = vmatprep.mubr.f32.mxu0 0.0
    %523 = vmatmul.mubr.f32.gmra.mrb[0].mxu0 %v443
    %v524 = vpop.f32.mrb[0].mxu0
    %v525 = vadd.f32 0.0, %v524
    %v526 = vpop.f32.mrb[0].mxu0
    %527 = vmatprep.mubr.f32.mxu0 0.0
    %528 = vmatmul.mubr.f32.gmra.mrb[0].mxu0 %v446
    %v529 = vpop.f32.mrb[0].mxu0
    %v530 = vadd.f32 0.0, %v529
    %v531 = vpop.f32.mrb[0].mxu0
    %532 = vdwg.mxu0
    %v541 = vunpack.c.l.b16 %v345
    %v542 = vunpack.c.l.b16 %v346
    %v543 = vunpack.c.l.b16 %v347
    %v544 = vunpack.c.l.b16 %v348
    %v545 = vunpack.c.l.b16 %v349
    %v546 = vunpack.c.l.b16 %v350
    %v547 = vunpack.c.l.b16 %v351
    %v548 = vunpack.c.l.b16 %v352
    %v549 = vpack.c.b16 %v542, %v541
    %v550 = vpack.c.b16 %v544, %v543
    %v551 = vpack.c.b16 %v546, %v545
    %v552 = vpack.c.b16 %v548, %v547
    %557 = vmatprep.subr.bf16.mxu0 0
    %558 = vmatpush1.bf16.msra.mxu0 %v549
    %559 = vmatprep.subr.bf16.mxu0 0
    %560 = vmatpush1.bf16.msra.mxu0 %v550
    %561 = vmatprep.subr.bf16.mxu0 0
    %562 = vmatpush1.bf16.msra.mxu0 %v551
    %563 = vmatprep.subr.bf16.mxu0 0
    %564 = vmatpush1.bf16.msra.mxu0 %v552
    %565 = vmatprep.subr.bf16.mxu0 0
    %566 = vmatpush1.bf16.msra.mxu0 0
    %567 = vmatprep.subr.bf16.mxu0 0
    %568 = vmatpush1.bf16.msra.mxu0 0
    %569 = vmatprep.subr.bf16.mxu0 0
    %570 = vmatpush1.bf16.msra.mxu0 0
    %571 = vmatprep.subr.bf16.mxu0 0
    %572 = vmatpush1.bf16.msra.mxu0 0
    %573 = vmatprep.subr.bf16.mxu0 0
    %574 = vmatpush1.bf16.msra.mxu0 0
    %575 = vmatprep.subr.bf16.mxu0 0
    %576 = vmatpush1.bf16.msra.mxu0 0
    %577 = vmatprep.subr.bf16.mxu0 0
    %578 = vmatpush1.bf16.msra.mxu0 0
    %579 = vmatprep.subr.bf16.mxu0 0
    %580 = vmatpush1.bf16.msra.mxu0 0
    %581 = vmatprep.subr.bf16.mxu0 0
    %582 = vmatpush1.bf16.msra.mxu0 0
    %583 = vmatprep.subr.bf16.mxu0 0
    %584 = vmatpush1.bf16.msra.mxu0 0
    %585 = vmatprep.subr.bf16.mxu0 0
    %586 = vmatpush1.bf16.msra.mxu0 0
    %587 = vmatprep.subr.bf16.mxu0 0
    %588 = vmatpush1.bf16.msra.mxu0 0
    %589 = vmatprep.mubr.bf16.mxu0 0
    %590 = vmatmul.mubr.bf16.gmra.mrb[0].mxu0 %v290
    %v591 = vpop.f32.mrb[0].mxu0
    %v592 = vadd.f32 %v515, %v591
    %v593 = vpop.f32.mrb[0].mxu0
    %v594 = vpop.f32.mrb[0].mxu0
    %v595 = vadd.f32 %v520, %v594
    %v596 = vpop.f32.mrb[0].mxu0
    %597 = vmatprep.mubr.bf16.mxu0 0
    %598 = vmatmul.mubr.bf16.gmra.mrb[0].mxu0 %v293
    %v599 = vpop.f32.mrb[0].mxu0
    %v600 = vadd.f32 %v525, %v599
    %v601 = vpop.f32.mrb[0].mxu0
    %v602 = vpop.f32.mrb[0].mxu0
    %v603 = vadd.f32 %v530, %v602
    %v604 = vpop.f32.mrb[0].mxu0
    %605 = vdwg.mxu0
    %v607 = vsel %vm435, %v246, 0
    %v610 = vsel %vm435, %v247, 0
    %v613 = vsel %vm435, %v248, 0
    %v616 = vsel %vm435, %v249, 0
    %618 = vmatprep.subr.mxu0 0.0
    %619 = vmatpush1.msra.mxu0 %v421
    %620 = vmatprep.subr.mxu0 0.0
    %621 = vmatpush1.msra.mxu0 %v424
    %622 = vmatprep.subr.mxu0 0.0
    %623 = vmatpush1.msra.mxu0 %v429
    %624 = vmatprep.subr.mxu0 0.0
    %625 = vmatpush1.msra.mxu0 %v432
    %626 = vmatprep.subr.mxu0 0.0
    %627 = vmatpush1.msra.mxu0 0.0
    %628 = vmatprep.subr.mxu0 0.0
    %629 = vmatpush1.msra.mxu0 0.0
    %630 = vmatprep.subr.mxu0 0.0
    %631 = vmatpush1.msra.mxu0 0.0
    %632 = vmatprep.subr.mxu0 0.0
    %633 = vmatpush1.msra.mxu0 0.0
    %634 = vmatprep.subr.mxu0 0.0
    %635 = vmatpush1.msra.mxu0 0.0
    %636 = vmatprep.subr.mxu0 0.0
    %637 = vmatpush1.msra.mxu0 0.0
    %638 = vmatprep.subr.mxu0 0.0
    %639 = vmatpush1.msra.mxu0 0.0
    %640 = vmatprep.subr.mxu0 0.0
    %641 = vmatpush1.msra.mxu0 0.0
    %642 = vmatprep.subr.mxu0 0.0
    %643 = vmatpush1.msra.mxu0 0.0
    %644 = vmatprep.subr.mxu0 0.0
    %645 = vmatpush1.msra.mxu0 0.0
    %646 = vmatprep.subr.mxu0 0.0
    %647 = vmatpush1.msra.mxu0 0.0
    %648 = vmatprep.subr.mxu0 0.0
    %649 = vmatpush1.msra.mxu0 0.0
    %650 = vmatprep.subr.mxu0 0.0
    %651 = vmatpush1.msra.mxu0 0.0
    %652 = vmatprep.subr.mxu0 0.0
    %653 = vmatpush1.msra.mxu0 0.0
    %654 = vmatprep.subr.mxu0 0.0
    %655 = vmatpush1.msra.mxu0 0.0
    %656 = vmatprep.subr.mxu0 0.0
    %657 = vmatpush1.msra.mxu0 0.0
    %658 = vmatprep.subr.mxu0 0.0
    %659 = vmatpush1.msra.mxu0 0.0
    %660 = vmatprep.subr.mxu0 0.0
    %661 = vmatpush1.msra.mxu0 0.0
    %662 = vmatprep.subr.mxu0 0.0
    %663 = vmatpush1.msra.mxu0 0.0
    %664 = vmatprep.subr.mxu0 0.0
    %665 = vmatpush1.msra.mxu0 0.0
    %666 = vmatprep.subr.mxu0 0.0
    %667 = vmatpush1.msra.mxu0 0.0
    %668 = vmatprep.subr.mxu0 0.0
    %669 = vmatpush1.msra.mxu0 0.0
    %670 = vmatprep.subr.mxu0 0.0
    %671 = vmatpush1.msra.mxu0 0.0
    %672 = vmatprep.subr.mxu0 0.0
    %673 = vmatpush1.msra.mxu0 0.0
    %674 = vmatprep.subr.mxu0 0.0
    %675 = vmatpush1.msra.mxu0 0.0
    %676 = vmatprep.subr.mxu0 0.0
    %677 = vmatpush1.msra.mxu0 0.0
    %678 = vmatprep.subr.mxu0 0.0
    %679 = vmatpush1.msra.mxu0 0.0
    %680 = vmatprep.subr.mxu0 0.0
    %681 = vmatpush1.msra.mxu0 0.0
    %682 = vmatprep.mubr.f32.mxu0 0.0
    %683 = vmatmul.mubr.f32.gmra.mrb[0].mxu0 %v607
    %v684 = vpop.f32.mrb[0].mxu0
    %v685 = vadd.f32 0.0, %v684
    %v686 = vpop.f32.mrb[0].mxu0
    %687 = vmatprep.mubr.f32.mxu0 0.0
    %688 = vmatmul.mubr.f32.gmra.mrb[0].mxu0 %v610
    %v689 = vpop.f32.mrb[0].mxu0
    %v690 = vadd.f32 0.0, %v689
    %v691 = vpop.f32.mrb[0].mxu0
    %692 = vmatprep.mubr.f32.mxu0 0.0
    %693 = vmatmul.mubr.f32.gmra.mrb[0].mxu0 %v613
    %v694 = vpop.f32.mrb[0].mxu0
    %v695 = vadd.f32 0.0, %v694
    %v696 = vpop.f32.mrb[0].mxu0
    %697 = vmatprep.mubr.f32.mxu0 0.0
    %698 = vmatmul.mubr.f32.gmra.mrb[0].mxu0 %v616
    %v699 = vpop.f32.mrb[0].mxu0
    %v700 = vadd.f32 0.0, %v699
    %v701 = vpop.f32.mrb[0].mxu0
    %702 = vdwg.mxu0
    %v703 = vadd.f32 %v592, %v685
    %v704 = vadd.f32 %v595, %v690
    %v705 = vadd.f32 %v600, %v695
    %v706 = vadd.f32 %v603, %v700
    %v707 = vld [vmem:[%s2] sm:$0x1]
    %v709 = vlaneseq
    %v710 = vshrl.u32 %v709, 7
    %v711 = vsub.s32 0, %v710
    %v712 = vrot.slane %v707, %v711
    %v714 = vadd.f32 %v703, %v712
    %v715 = vadd.f32 %v704, %v712
    %v716 = vadd.f32 %v705, %v712
    %v717 = vadd.f32 %v706, %v712
    %vm718 = vcmp.ge.f32.partialorder %v714, 0.0
    %vm719 = vcmp.ge.f32.partialorder %v715, 0.0
    %vm720 = vcmp.ge.f32.partialorder %v716, 0.0
    %vm721 = vcmp.ge.f32.partialorder %v717, 0.0
    %v722 = vmul.f32 %v714, 0.01
    %v723 = vmul.f32 %v715, 0.01
    %v724 = vmul.f32 %v716, 0.01
    %v725 = vmul.f32 %v717, 0.01
    %v726 = vsel %vm718, %v714, %v722
    %v727 = vsel %vm719, %v715, %v723
    %v728 = vsel %vm720, %v716, %v724
    %v729 = vsel %vm721, %v717, %v725
    %v730 = vpack.c.bf16 %v727, %v726
    %v731 = vpack.c.bf16 %v729, %v728
    %v732 = vld [vmem:[#allocation8] sm:$0xf]
    %v733 = vld [vmem:[#allocation8 + $0x4] sm:$0xf]
    %v734 = vld [vmem:[#allocation8 + $0x8] sm:$0xf]
    %v735 = vld [vmem:[#allocation8 + $0xc] sm:$0xf]
    %v736 = vld [vmem:[#allocation8 + $0x10] sm:$0xf]
    %v737 = vld [vmem:[#allocation8 + $0x14] sm:$0xf]
    %v738 = vld [vmem:[#allocation8 + $0x18] sm:$0xf]
    %v739 = vld [vmem:[#allocation8 + $0x1c] sm:$0xf]
    %v740 = vld [vmem:[#allocation8 + $0x20] sm:$0xf]
    %v741 = vld [vmem:[#allocation8 + $0x24] sm:$0xf]
    %v742 = vld [vmem:[#allocation8 + $0x28] sm:$0xf]
    %v743 = vld [vmem:[#allocation8 + $0x2c] sm:$0xf]
    %v744 = vld [vmem:[#allocation8 + $0x30] sm:$0xf]
    %v745 = vld [vmem:[#allocation8 + $0x34] sm:$0xf]
    %v746 = vld [vmem:[#allocation8 + $0x38] sm:$0xf]
    %v747 = vld [vmem:[#allocation8 + $0x3c] sm:$0xf]
    %v764 = vunpack.c.l.b16 %v732
    %v765 = vunpack.c.l.b16 %v733
    %v766 = vunpack.c.l.b16 %v734
    %v767 = vunpack.c.l.b16 %v735
    %v768 = vunpack.c.l.b16 %v736
    %v769 = vunpack.c.l.b16 %v737
    %v770 = vunpack.c.l.b16 %v738
    %v771 = vunpack.c.l.b16 %v739
    %v772 = vunpack.c.l.b16 %v740
    %v773 = vunpack.c.l.b16 %v741
    %v774 = vunpack.c.l.b16 %v742
    %v775 = vunpack.c.l.b16 %v743
    %v776 = vunpack.c.l.b16 %v744
    %v777 = vunpack.c.l.b16 %v745
    %v778 = vunpack.c.l.b16 %v746
    %v779 = vunpack.c.l.b16 %v747
    %v780 = vpack.c.b16 %v765, %v764
    %v781 = vpack.c.b16 %v767, %v766
    %v782 = vpack.c.b16 %v769, %v768
    %v783 = vpack.c.b16 %v771, %v770
    %v784 = vpack.c.b16 %v773, %v772
    %v785 = vpack.c.b16 %v775, %v774
    %v786 = vpack.c.b16 %v777, %v776
    %v787 = vpack.c.b16 %v779, %v778
    %796 = vmatprep.subr.bf16.mxu0 0
    %797 = vmatpush1.bf16.msra.mxu0 %v780
    %798 = vmatprep.subr.bf16.mxu0 0
    %799 = vmatpush1.bf16.msra.mxu0 %v781
    %800 = vmatprep.subr.bf16.mxu0 0
    %801 = vmatpush1.bf16.msra.mxu0 %v782
    %802 = vmatprep.subr.bf16.mxu0 0
    %803 = vmatpush1.bf16.msra.mxu0 %v783
    %804 = vmatprep.subr.bf16.mxu0 0
    %805 = vmatpush1.bf16.msra.mxu0 %v784
    %806 = vmatprep.subr.bf16.mxu0 0
    %807 = vmatpush1.bf16.msra.mxu0 %v785
    %808 = vmatprep.subr.bf16.mxu0 0
    %809 = vmatpush1.bf16.msra.mxu0 %v786
    %810 = vmatprep.subr.bf16.mxu0 0
    %811 = vmatpush1.bf16.msra.mxu0 %v787
    %812 = vmatprep.subr.bf16.mxu0 0
    %813 = vmatpush1.bf16.msra.mxu0 0
    %814 = vmatprep.subr.bf16.mxu0 0
    %815 = vmatpush1.bf16.msra.mxu0 0
    %816 = vmatprep.subr.bf16.mxu0 0
    %817 = vmatpush1.bf16.msra.mxu0 0
    %818 = vmatprep.subr.bf16.mxu0 0
    %819 = vmatpush1.bf16.msra.mxu0 0
    %820 = vmatprep.subr.bf16.mxu0 0
    %821 = vmatpush1.bf16.msra.mxu0 0
    %822 = vmatprep.subr.bf16.mxu0 0
    %823 = vmatpush1.bf16.msra.mxu0 0
    %824 = vmatprep.subr.bf16.mxu0 0
    %825 = vmatpush1.bf16.msra.mxu0 0
    %826 = vmatprep.subr.bf16.mxu0 0
    %827 = vmatpush1.bf16.msra.mxu0 0
    %828 = vmatprep.mubr.bf16.mxu0 0
    %829 = vmatmul.mubr.bf16.gmra.mrb[0].mxu0 %v730
    %v830 = vpop.f32.mrb[0].mxu0
    %v831 = vadd.f32 0.0, %v830
    %v832 = vpop.f32.mrb[0].mxu0
    %v833 = vpop.f32.mrb[0].mxu0
    %v834 = vadd.f32 0.0, %v833
    %v835 = vpop.f32.mrb[0].mxu0
    %836 = vmatprep.mubr.bf16.mxu0 0
    %837 = vmatmul.mubr.bf16.gmra.mrb[0].mxu0 %v731
    %v838 = vpop.f32.mrb[0].mxu0
    %v839 = vadd.f32 0.0, %v838
    %v840 = vpop.f32.mrb[0].mxu0
    %v841 = vpop.f32.mrb[0].mxu0
    %v842 = vadd.f32 0.0, %v841
    %v843 = vpop.f32.mrb[0].mxu0
    %844 = vdwg.mxu0
    %s845 = scalar_lea.vmem [#allocation8], 64
    %v846 = vld [vmem:[%s845] sm:$0xf]
    %v847 = vld [vmem:[%s845 + $0x4] sm:$0xf]
    %v848 = vld [vmem:[%s845 + $0x8] sm:$0xf]
    %v849 = vld [vmem:[%s845 + $0xc] sm:$0xf]
    %v850 = vld [vmem:[%s845 + $0x10] sm:$0xf]
    %v851 = vld [vmem:[%s845 + $0x14] sm:$0xf]
    %v852 = vld [vmem:[%s845 + $0x18] sm:$0xf]
    %v853 = vld [vmem:[%s845 + $0x1c] sm:$0xf]
    %v854 = vld [vmem:[%s845 + $0x20] sm:$0xf]
    %v855 = vld [vmem:[%s845 + $0x24] sm:$0xf]
    %v856 = vld [vmem:[%s845 + $0x28] sm:$0xf]
    %v857 = vld [vmem:[%s845 + $0x2c] sm:$0xf]
    %v858 = vld [vmem:[%s845 + $0x30] sm:$0xf]
    %v859 = vld [vmem:[%s845 + $0x34] sm:$0xf]
    %v860 = vld [vmem:[%s845 + $0x38] sm:$0xf]
    %v861 = vld [vmem:[%s845 + $0x3c] sm:$0xf]
    %s862 = scalar_lea.vmem [#allocation8], 128
    %v863 = vld [vmem:[%s862] sm:$0xf]
    %v864 = vld [vmem:[%s862 + $0x4] sm:$0xf]
    %v865 = vld [vmem:[%s862 + $0x8] sm:$0xf]
    %v866 = vld [vmem:[%s862 + $0xc] sm:$0xf]
    %v867 = vld [vmem:[%s862 + $0x10] sm:$0xf]
    %v868 = vld [vmem:[%s862 + $0x14] sm:$0xf]
    %v869 = vld [vmem:[%s862 + $0x18] sm:$0xf]
    %v870 = vld [vmem:[%s862 + $0x1c] sm:$0xf]
    %v871 = vld [vmem:[%s862 + $0x20] sm:$0xf]
    %v872 = vld [vmem:[%s862 + $0x24] sm:$0xf]
    %v873 = vld [vmem:[%s862 + $0x28] sm:$0xf]
    %v874 = vld [vmem:[%s862 + $0x2c] sm:$0xf]
    %v875 = vld [vmem:[%s862 + $0x30] sm:$0xf]
    %v876 = vld [vmem:[%s862 + $0x34] sm:$0xf]
    %v877 = vld [vmem:[%s862 + $0x38] sm:$0xf]
    %v878 = vld [vmem:[%s862 + $0x3c] sm:$0xf]
    %v895 = vunpack.c.l.b16 %v863
    %v896 = vunpack.c.l.b16 %v864
    %v897 = vunpack.c.l.b16 %v865
    %v898 = vunpack.c.l.b16 %v866
    %v899 = vunpack.c.l.b16 %v867
    %v900 = vunpack.c.l.b16 %v868
    %v901 = vunpack.c.l.b16 %v869
    %v902 = vunpack.c.l.b16 %v870
    %v903 = vunpack.c.l.b16 %v871
    %v904 = vunpack.c.l.b16 %v872
    %v905 = vunpack.c.l.b16 %v873
    %v906 = vunpack.c.l.b16 %v874
    %v907 = vunpack.c.l.b16 %v875
    %v908 = vunpack.c.l.b16 %v876
    %v909 = vunpack.c.l.b16 %v877
    %v910 = vunpack.c.l.b16 %v878
    %v911 = vpack.c.b16 %v896, %v895
    %v912 = vpack.c.b16 %v898, %v897
    %v913 = vpack.c.b16 %v900, %v899
    %v914 = vpack.c.b16 %v902, %v901
    %v915 = vpack.c.b16 %v904, %v903
    %v916 = vpack.c.b16 %v906, %v905
    %v917 = vpack.c.b16 %v908, %v907
    %v918 = vpack.c.b16 %v910, %v909
    %927 = vmatprep.subr.bf16.mxu0 0
    %928 = vmatpush1.bf16.msra.mxu0 %v911
    %929 = vmatprep.subr.bf16.mxu0 0
    %930 = vmatpush1.bf16.msra.mxu0 %v912
    %931 = vmatprep.subr.bf16.mxu0 0
    %932 = vmatpush1.bf16.msra.mxu0 %v913
    %933 = vmatprep.subr.bf16.mxu0 0
    %934 = vmatpush1.bf16.msra.mxu0 %v914
    %935 = vmatprep.subr.bf16.mxu0 0
    %936 = vmatpush1.bf16.msra.mxu0 %v915
    %937 = vmatprep.subr.bf16.mxu0 0
    %938 = vmatpush1.bf16.msra.mxu0 %v916
    %939 = vmatprep.subr.bf16.mxu0 0
    %940 = vmatpush1.bf16.msra.mxu0 %v917
    %941 = vmatprep.subr.bf16.mxu0 0
    %942 = vmatpush1.bf16.msra.mxu0 %v918
    %943 = vmatprep.subr.bf16.mxu0 0
    %944 = vmatpush1.bf16.msra.mxu0 0
    %945 = vmatprep.subr.bf16.mxu0 0
    %946 = vmatpush1.bf16.msra.mxu0 0
    %947 = vmatprep.subr.bf16.mxu0 0
    %948 = vmatpush1.bf16.msra.mxu0 0
    %949 = vmatprep.subr.bf16.mxu0 0
    %950 = vmatpush1.bf16.msra.mxu0 0
    %951 = vmatprep.subr.bf16.mxu0 0
    %952 = vmatpush1.bf16.msra.mxu0 0
    %953 = vmatprep.subr.bf16.mxu0 0
    %954 = vmatpush1.bf16.msra.mxu0 0
    %955 = vmatprep.subr.bf16.mxu0 0
    %956 = vmatpush1.bf16.msra.mxu0 0
    %957 = vmatprep.subr.bf16.mxu0 0
    %958 = vmatpush1.bf16.msra.mxu0 0
    %959 = vmatprep.mubr.bf16.mxu0 0
    %960 = vmatmul.mubr.bf16.gmra.mrb[0].mxu0 %v730
    %v961 = vpop.f32.mrb[0].mxu0
    %v962 = vadd.f32 0.0, %v961
    %v963 = vpop.f32.mrb[0].mxu0
    %v964 = vpop.f32.mrb[0].mxu0
    %v965 = vadd.f32 0.0, %v964
    %v966 = vpop.f32.mrb[0].mxu0
    %967 = vmatprep.mubr.bf16.mxu0 0
    %968 = vmatmul.mubr.bf16.gmra.mrb[0].mxu0 %v731
    %v969 = vpop.f32.mrb[0].mxu0
    %v970 = vadd.f32 0.0, %v969
    %v971 = vpop.f32.mrb[0].mxu0
    %v972 = vpop.f32.mrb[0].mxu0
    %v973 = vadd.f32 0.0, %v972
    %v974 = vpop.f32.mrb[0].mxu0
    %975 = vdwg.mxu0
    %976 = vmatprep.subr.mxu0 0.0
    %977 = vmatpush1.msra.mxu0 %v831
    %978 = vmatprep.subr.mxu0 0.0
    %979 = vmatpush1.msra.mxu0 %v834
    %980 = vmatprep.subr.mxu0 0.0
    %981 = vmatpush1.msra.mxu0 %v839
    %982 = vmatprep.subr.mxu0 0.0
    %983 = vmatpush1.msra.mxu0 %v842
    %984 = vmatprep.subr.mxu0 0.0
    %985 = vmatpush1.msra.mxu0 0.0
    %986 = vmatprep.subr.mxu0 0.0
    %987 = vmatpush1.msra.mxu0 0.0
    %988 = vmatprep.subr.mxu0 0.0
    %989 = vmatpush1.msra.mxu0 0.0
    %990 = vmatprep.subr.mxu0 0.0
    %991 = vmatpush1.msra.mxu0 0.0
    %992 = vmatprep.subr.mxu0 0.0
    %993 = vmatpush1.msra.mxu0 0.0
    %994 = vmatprep.subr.mxu0 0.0
    %995 = vmatpush1.msra.mxu0 0.0
    %996 = vmatprep.subr.mxu0 0.0
    %997 = vmatpush1.msra.mxu0 0.0
    %998 = vmatprep.subr.mxu0 0.0
    %999 = vmatpush1.msra.mxu0 0.0
    %1000 = vmatprep.subr.mxu0 0.0
    %1001 = vmatpush1.msra.mxu0 0.0
    %1002 = vmatprep.subr.mxu0 0.0
    %1003 = vmatpush1.msra.mxu0 0.0
    %1004 = vmatprep.subr.mxu0 0.0
    %1005 = vmatpush1.msra.mxu0 0.0
    %1006 = vmatprep.subr.mxu0 0.0
    %1007 = vmatpush1.msra.mxu0 0.0
    %1008 = vmatprep.subr.mxu0 0.0
    %1009 = vmatpush1.msra.mxu0 0.0
    %1010 = vmatprep.subr.mxu0 0.0
    %1011 = vmatpush1.msra.mxu0 0.0
    %1012 = vmatprep.subr.mxu0 0.0
    %1013 = vmatpush1.msra.mxu0 0.0
    %1014 = vmatprep.subr.mxu0 0.0
    %1015 = vmatpush1.msra.mxu0 0.0
    %1016 = vmatprep.subr.mxu0 0.0
    %1017 = vmatpush1.msra.mxu0 0.0
    %1018 = vmatprep.subr.mxu0 0.0
    %1019 = vmatpush1.msra.mxu0 0.0
    %1020 = vmatprep.subr.mxu0 0.0
    %1021 = vmatpush1.msra.mxu0 0.0
    %1022 = vmatprep.subr.mxu0 0.0
    %1023 = vmatpush1.msra.mxu0 0.0
    %1024 = vmatprep.subr.mxu0 0.0
    %1025 = vmatpush1.msra.mxu0 0.0
    %1026 = vmatprep.subr.mxu0 0.0
    %1027 = vmatpush1.msra.mxu0 0.0
    %1028 = vmatprep.subr.mxu0 0.0
    %1029 = vmatpush1.msra.mxu0 0.0
    %1030 = vmatprep.subr.mxu0 0.0
    %1031 = vmatpush1.msra.mxu0 0.0
    %1032 = vmatprep.subr.mxu0 0.0
    %1033 = vmatpush1.msra.mxu0 0.0
    %1034 = vmatprep.subr.mxu0 0.0
    %1035 = vmatpush1.msra.mxu0 0.0
    %1036 = vmatprep.subr.mxu0 0.0
    %1037 = vmatpush1.msra.mxu0 0.0
    %1038 = vmatprep.subr.mxu0 0.0
    %1039 = vmatpush1.msra.mxu0 0.0
    %1040 = vmatprep.mubr.f32.mxu0 0.0
    %1041 = vmatmul.mubr.f32.gmra.mrb[0].mxu0 %v437
    %v1042 = vpop.f32.mrb[0].mxu0
    %v1043 = vadd.f32 0.0, %v1042
    %v1044 = vpop.f32.mrb[0].mxu0
    %1045 = vmatprep.mubr.f32.mxu0 0.0
    %1046 = vmatmul.mubr.f32.gmra.mrb[0].mxu0 %v440
    %v1047 = vpop.f32.mrb[0].mxu0
    %v1048 = vadd.f32 0.0, %v1047
    %v1049 = vpop.f32.mrb[0].mxu0
    %1050 = vmatprep.mubr.f32.mxu0 0.0
    %1051 = vmatmul.mubr.f32.gmra.mrb[0].mxu0 %v443
    %v1052 = vpop.f32.mrb[0].mxu0
    %v1053 = vadd.f32 0.0, %v1052
    %v1054 = vpop.f32.mrb[0].mxu0
    %1055 = vmatprep.mubr.f32.mxu0 0.0
    %1056 = vmatmul.mubr.f32.gmra.mrb[0].mxu0 %v446
    %v1057 = vpop.f32.mrb[0].mxu0
    %v1058 = vadd.f32 0.0, %v1057
    %v1059 = vpop.f32.mrb[0].mxu0
    %1060 = vdwg.mxu0
    %v1077 = vunpack.c.l.b16 %v846
    %v1078 = vunpack.c.l.b16 %v847
    %v1079 = vunpack.c.l.b16 %v848
    %v1080 = vunpack.c.l.b16 %v849
    %v1081 = vunpack.c.l.b16 %v850
    %v1082 = vunpack.c.l.b16 %v851
    %v1083 = vunpack.c.l.b16 %v852
    %v1084 = vunpack.c.l.b16 %v853
    %v1085 = vunpack.c.l.b16 %v854
    %v1086 = vunpack.c.l.b16 %v855
    %v1087 = vunpack.c.l.b16 %v856
    %v1088 = vunpack.c.l.b16 %v857
    %v1089 = vunpack.c.l.b16 %v858
    %v1090 = vunpack.c.l.b16 %v859
    %v1091 = vunpack.c.l.b16 %v860
    %v1092 = vunpack.c.l.b16 %v861
    %v1093 = vpack.c.b16 %v1078, %v1077
    %v1094 = vpack.c.b16 %v1080, %v1079
    %v1095 = vpack.c.b16 %v1082, %v1081
    %v1096 = vpack.c.b16 %v1084, %v1083
    %v1097 = vpack.c.b16 %v1086, %v1085
    %v1098 = vpack.c.b16 %v1088, %v1087
    %v1099 = vpack.c.b16 %v1090, %v1089
    %v1100 = vpack.c.b16 %v1092, %v1091
    %1109 = vmatprep.subr.bf16.mxu0 0
    %1110 = vmatpush1.bf16.msra.mxu0 %v1093
    %1111 = vmatprep.subr.bf16.mxu0 0
    %1112 = vmatpush1.bf16.msra.mxu0 %v1094
    %1113 = vmatprep.subr.bf16.mxu0 0
    %1114 = vmatpush1.bf16.msra.mxu0 %v1095
    %1115 = vmatprep.subr.bf16.mxu0 0
    %1116 = vmatpush1.bf16.msra.mxu0 %v1096
    %1117 = vmatprep.subr.bf16.mxu0 0
    %1118 = vmatpush1.bf16.msra.mxu0 %v1097
    %1119 = vmatprep.subr.bf16.mxu0 0
    %1120 = vmatpush1.bf16.msra.mxu0 %v1098
    %1121 = vmatprep.subr.bf16.mxu0 0
    %1122 = vmatpush1.bf16.msra.mxu0 %v1099
    %1123 = vmatprep.subr.bf16.mxu0 0
    %1124 = vmatpush1.bf16.msra.mxu0 %v1100
    %1125 = vmatprep.subr.bf16.mxu0 0
    %1126 = vmatpush1.bf16.msra.mxu0 0
    %1127 = vmatprep.subr.bf16.mxu0 0
    %1128 = vmatpush1.bf16.msra.mxu0 0
    %1129 = vmatprep.subr.bf16.mxu0 0
    %1130 = vmatpush1.bf16.msra.mxu0 0
    %1131 = vmatprep.subr.bf16.mxu0 0
    %1132 = vmatpush1.bf16.msra.mxu0 0
    %1133 = vmatprep.subr.bf16.mxu0 0
    %1134 = vmatpush1.bf16.msra.mxu0 0
    %1135 = vmatprep.subr.bf16.mxu0 0
    %1136 = vmatpush1.bf16.msra.mxu0 0
    %1137 = vmatprep.subr.bf16.mxu0 0
    %1138 = vmatpush1.bf16.msra.mxu0 0
    %1139 = vmatprep.subr.bf16.mxu0 0
    %1140 = vmatpush1.bf16.msra.mxu0 0
    %1141 = vmatprep.mubr.bf16.mxu0 0
    %1142 = vmatmul.mubr.bf16.gmra.mrb[0].mxu0 %v730
    %v1143 = vpop.f32.mrb[0].mxu0
    %v1144 = vadd.f32 %v1043, %v1143
    %v1145 = vpop.f32.mrb[0].mxu0
    %v1146 = vpop.f32.mrb[0].mxu0
    %v1147 = vadd.f32 %v1048, %v1146
    %v1148 = vpop.f32.mrb[0].mxu0
    %1149 = vmatprep.mubr.bf16.mxu0 0
    %1150 = vmatmul.mubr.bf16.gmra.mrb[0].mxu0 %v731
    %v1151 = vpop.f32.mrb[0].mxu0
    %v1152 = vadd.f32 %v1053, %v1151
    %v1153 = vpop.f32.mrb[0].mxu0
    %v1154 = vpop.f32.mrb[0].mxu0
    %v1155 = vadd.f32 %v1058, %v1154
    %v1156 = vpop.f32.mrb[0].mxu0
    %1157 = vdwg.mxu0
    %1158 = vmatprep.subr.mxu0 0.0
    %1159 = vmatpush1.msra.mxu0 %v962
    %1160 = vmatprep.subr.mxu0 0.0
    %1161 = vmatpush1.msra.mxu0 %v965
    %1162 = vmatprep.subr.mxu0 0.0
    %1163 = vmatpush1.msra.mxu0 %v970
    %1164 = vmatprep.subr.mxu0 0.0
    %1165 = vmatpush1.msra.mxu0 %v973
    %1166 = vmatprep.subr.mxu0 0.0
    %1167 = vmatpush1.msra.mxu0 0.0
    %1168 = vmatprep.subr.mxu0 0.0
    %1169 = vmatpush1.msra.mxu0 0.0
    %1170 = vmatprep.subr.mxu0 0.0
    %1171 = vmatpush1.msra.mxu0 0.0
    %1172 = vmatprep.subr.mxu0 0.0
    %1173 = vmatpush1.msra.mxu0 0.0
    %1174 = vmatprep.subr.mxu0 0.0
    %1175 = vmatpush1.msra.mxu0 0.0
    %1176 = vmatprep.subr.mxu0 0.0
    %1177 = vmatpush1.msra.mxu0 0.0
    %1178 = vmatprep.subr.mxu0 0.0
    %1179 = vmatpush1.msra.mxu0 0.0
    %1180 = vmatprep.subr.mxu0 0.0
    %1181 = vmatpush1.msra.mxu0 0.0
    %1182 = vmatprep.subr.mxu0 0.0
    %1183 = vmatpush1.msra.mxu0 0.0
    %1184 = vmatprep.subr.mxu0 0.0
    %1185 = vmatpush1.msra.mxu0 0.0
    %1186 = vmatprep.subr.mxu0 0.0
    %1187 = vmatpush1.msra.mxu0 0.0
    %1188 = vmatprep.subr.mxu0 0.0
    %1189 = vmatpush1.msra.mxu0 0.0
    %1190 = vmatprep.subr.mxu0 0.0
    %1191 = vmatpush1.msra.mxu0 0.0
    %1192 = vmatprep.subr.mxu0 0.0
    %1193 = vmatpush1.msra.mxu0 0.0
    %1194 = vmatprep.subr.mxu0 0.0
    %1195 = vmatpush1.msra.mxu0 0.0
    %1196 = vmatprep.subr.mxu0 0.0
    %1197 = vmatpush1.msra.mxu0 0.0
    %1198 = vmatprep.subr.mxu0 0.0
    %1199 = vmatpush1.msra.mxu0 0.0
    %1200 = vmatprep.subr.mxu0 0.0
    %1201 = vmatpush1.msra.mxu0 0.0
    %1202 = vmatprep.subr.mxu0 0.0
    %1203 = vmatpush1.msra.mxu0 0.0
    %1204 = vmatprep.subr.mxu0 0.0
    %1205 = vmatpush1.msra.mxu0 0.0
    %1206 = vmatprep.subr.mxu0 0.0
    %1207 = vmatpush1.msra.mxu0 0.0
    %1208 = vmatprep.subr.mxu0 0.0
    %1209 = vmatpush1.msra.mxu0 0.0
    %1210 = vmatprep.subr.mxu0 0.0
    %1211 = vmatpush1.msra.mxu0 0.0
    %1212 = vmatprep.subr.mxu0 0.0
    %1213 = vmatpush1.msra.mxu0 0.0
    %1214 = vmatprep.subr.mxu0 0.0
    %1215 = vmatpush1.msra.mxu0 0.0
    %1216 = vmatprep.subr.mxu0 0.0
    %1217 = vmatpush1.msra.mxu0 0.0
    %1218 = vmatprep.subr.mxu0 0.0
    %1219 = vmatpush1.msra.mxu0 0.0
    %1220 = vmatprep.subr.mxu0 0.0
    %1221 = vmatpush1.msra.mxu0 0.0
    %1222 = vmatprep.mubr.f32.mxu0 0.0
    %1223 = vmatmul.mubr.f32.gmra.mrb[0].mxu0 %v607
    %v1224 = vpop.f32.mrb[0].mxu0
    %v1225 = vadd.f32 0.0, %v1224
    %v1226 = vpop.f32.mrb[0].mxu0
    %1227 = vmatprep.mubr.f32.mxu0 0.0
    %1228 = vmatmul.mubr.f32.gmra.mrb[0].mxu0 %v610
    %v1229 = vpop.f32.mrb[0].mxu0
    %v1230 = vadd.f32 0.0, %v1229
    %v1231 = vpop.f32.mrb[0].mxu0
    %1232 = vmatprep.mubr.f32.mxu0 0.0
    %1233 = vmatmul.mubr.f32.gmra.mrb[0].mxu0 %v613
    %v1234 = vpop.f32.mrb[0].mxu0
    %v1235 = vadd.f32 0.0, %v1234
    %v1236 = vpop.f32.mrb[0].mxu0
    %1237 = vmatprep.mubr.f32.mxu0 0.0
    %1238 = vmatmul.mubr.f32.gmra.mrb[0].mxu0 %v616
    %v1239 = vpop.f32.mrb[0].mxu0
    %v1240 = vadd.f32 0.0, %v1239
    %v1241 = vpop.f32.mrb[0].mxu0
    %1242 = vdwg.mxu0
    %v1243 = vadd.f32 %v1144, %v1225
    %v1244 = vadd.f32 %v1147, %v1230
    %v1245 = vadd.f32 %v1152, %v1235
    %v1246 = vadd.f32 %v1155, %v1240
    %v1247 = vld [vmem:[%s4] sm:$0x1]
    %v1249 = vlaneseq
    %v1250 = vshrl.u32 %v1249, 7
    %v1251 = vsub.s32 0, %v1250
    %v1252 = vrot.slane %v1247, %v1251
    %v1254 = vadd.f32 %v1243, %v1252
    %v1255 = vadd.f32 %v1244, %v1252
    %v1256 = vadd.f32 %v1245, %v1252
    %v1257 = vadd.f32 %v1246, %v1252
    %vm1258 = vcmp.ge.f32.partialorder %v1254, 0.0
    %vm1259 = vcmp.ge.f32.partialorder %v1255, 0.0
    %vm1260 = vcmp.ge.f32.partialorder %v1256, 0.0
    %vm1261 = vcmp.ge.f32.partialorder %v1257, 0.0
    %v1262 = vmul.f32 %v1254, 0.01
    %v1263 = vmul.f32 %v1255, 0.01
    %v1264 = vmul.f32 %v1256, 0.01
    %v1265 = vmul.f32 %v1257, 0.01
    %v1266 = vsel %vm1258, %v1254, %v1262
    %v1267 = vsel %vm1259, %v1255, %v1263
    %v1268 = vsel %vm1260, %v1256, %v1264
    %v1269 = vsel %vm1261, %v1257, %v1265
    %1270 = vst.msk [vmem:[#allocation9] sm:$0xff] %vm79, %v1266
    %1271 = vst.msk [vmem:[#allocation9 + $0x8] sm:$0xff] %vm79, %v1267
    %1272 = vst.msk [vmem:[#allocation9 + $0x80] sm:$0xff] %vm79, %v1268
    %1273 = vst.msk [vmem:[#allocation9 + $0x88] sm:$0xff] %vm79, %v1269
    %1278 = vrot.lane.b32.xlu0 %v1266, 112
    %v1279 = vpop.permute.xlu0 %1278
    %1280 = vrot.lane.b32.xlu0 %v1267, 112
    %v1281 = vpop.permute.xlu0 %1280
    %1282 = vrot.lane.b32.xlu0 %v1268, 112
    %v1283 = vpop.permute.xlu0 %1282
    %1284 = vrot.lane.b32.xlu0 %v1269, 112
    %v1285 = vpop.permute.xlu0 %1284
    %s1290 = scalar_lea.vmem [#allocation9], 16
    %1291 = vst.msk [vmem:[%s1290] sm:$0xff] %vm79, %v1279
    %1292 = vst.msk [vmem:[%s1290 + $0x8] sm:$0xff] %vm79, %v1281
    %1293 = vst.msk [vmem:[%s1290 + $0x80] sm:$0xff] %vm79, %v1283
    %1294 = vst.msk [vmem:[%s1290 + $0x88] sm:$0xff] %vm79, %v1285
    %1295 = vrot.lane.b32.xlu0 %v1266, 96
    %v1296 = vpop.permute.xlu0 %1295
    %1297 = vrot.lane.b32.xlu0 %v1267, 96
    %v1298 = vpop.permute.xlu0 %1297
    %1299 = vrot.lane.b32.xlu0 %v1268, 96
    %v1300 = vpop.permute.xlu0 %1299
    %1301 = vrot.lane.b32.xlu0 %v1269, 96
    %v1302 = vpop.permute.xlu0 %1301
    %s1307 = scalar_lea.vmem [#allocation9], 32
    %1308 = vst.msk [vmem:[%s1307] sm:$0xff] %vm79, %v1296
    %1309 = vst.msk [vmem:[%s1307 + $0x8] sm:$0xff] %vm79, %v1298
    %1310 = vst.msk [vmem:[%s1307 + $0x80] sm:$0xff] %vm79, %v1300
    %1311 = vst.msk [vmem:[%s1307 + $0x88] sm:$0xff] %vm79, %v1302
    %1312 = vrot.lane.b32.xlu0 %v1266, 80
    %v1313 = vpop.permute.xlu0 %1312
    %1314 = vrot.lane.b32.xlu0 %v1267, 80
    %v1315 = vpop.permute.xlu0 %1314
    %1316 = vrot.lane.b32.xlu0 %v1268, 80
    %v1317 = vpop.permute.xlu0 %1316
    %1318 = vrot.lane.b32.xlu0 %v1269, 80
    %v1319 = vpop.permute.xlu0 %1318
    %s1324 = scalar_lea.vmem [#allocation9], 48
    %1325 = vst.msk [vmem:[%s1324] sm:$0xff] %vm79, %v1313
    %1326 = vst.msk [vmem:[%s1324 + $0x8] sm:$0xff] %vm79, %v1315
    %1327 = vst.msk [vmem:[%s1324 + $0x80] sm:$0xff] %vm79, %v1317
    %1328 = vst.msk [vmem:[%s1324 + $0x88] sm:$0xff] %vm79, %v1319
    %1329 = vrot.lane.b32.xlu0 %v1266, 64
    %v1330 = vpop.permute.xlu0 %1329
    %1331 = vrot.lane.b32.xlu0 %v1267, 64
    %v1332 = vpop.permute.xlu0 %1331
    %1333 = vrot.lane.b32.xlu0 %v1268, 64
    %v1334 = vpop.permute.xlu0 %1333
    %1335 = vrot.lane.b32.xlu0 %v1269, 64
    %v1336 = vpop.permute.xlu0 %1335
    %s1341 = scalar_lea.vmem [#allocation9], 64
    %1342 = vst.msk [vmem:[%s1341] sm:$0xff] %vm79, %v1330
    %1343 = vst.msk [vmem:[%s1341 + $0x8] sm:$0xff] %vm79, %v1332
    %1344 = vst.msk [vmem:[%s1341 + $0x80] sm:$0xff] %vm79, %v1334
    %1345 = vst.msk [vmem:[%s1341 + $0x88] sm:$0xff] %vm79, %v1336
    %1346 = vrot.lane.b32.xlu0 %v1266, 48
    %v1347 = vpop.permute.xlu0 %1346
    %1348 = vrot.lane.b32.xlu0 %v1267, 48
    %v1349 = vpop.permute.xlu0 %1348
    %1350 = vrot.lane.b32.xlu0 %v1268, 48
    %v1351 = vpop.permute.xlu0 %1350
    %1352 = vrot.lane.b32.xlu0 %v1269, 48
    %v1353 = vpop.permute.xlu0 %1352
    %s1358 = scalar_lea.vmem [#allocation9], 80
    %1359 = vst.msk [vmem:[%s1358] sm:$0xff] %vm79, %v1347
    %1360 = vst.msk [vmem:[%s1358 + $0x8] sm:$0xff] %vm79, %v1349
    %1361 = vst.msk [vmem:[%s1358 + $0x80] sm:$0xff] %vm79, %v1351
    %1362 = vst.msk [vmem:[%s1358 + $0x88] sm:$0xff] %vm79, %v1353
    %1363 = vrot.lane.b32.xlu0 %v1266, 32
    %v1364 = vpop.permute.xlu0 %1363
    %1365 = vrot.lane.b32.xlu0 %v1267, 32
    %v1366 = vpop.permute.xlu0 %1365
    %1367 = vrot.lane.b32.xlu0 %v1268, 32
    %v1368 = vpop.permute.xlu0 %1367
    %1369 = vrot.lane.b32.xlu0 %v1269, 32
    %v1370 = vpop.permute.xlu0 %1369
    %s1375 = scalar_lea.vmem [#allocation9], 96
    %1376 = vst.msk [vmem:[%s1375] sm:$0xff] %vm79, %v1364
    %1377 = vst.msk [vmem:[%s1375 + $0x8] sm:$0xff] %vm79, %v1366
    %1378 = vst.msk [vmem:[%s1375 + $0x80] sm:$0xff] %vm79, %v1368
    %1379 = vst.msk [vmem:[%s1375 + $0x88] sm:$0xff] %vm79, %v1370
    %1380 = vrot.lane.b32.xlu0 %v1266, 16
    %v1381 = vpop.permute.xlu0 %1380
    %1382 = vrot.lane.b32.xlu0 %v1267, 16
    %v1383 = vpop.permute.xlu0 %1382
    %1384 = vrot.lane.b32.xlu0 %v1268, 16
    %v1385 = vpop.permute.xlu0 %1384
    %1386 = vrot.lane.b32.xlu0 %v1269, 16
    %v1387 = vpop.permute.xlu0 %1386
    %s1392 = scalar_lea.vmem [#allocation9], 112
    %1393 = vst.msk [vmem:[%s1392] sm:$0xff] %vm79, %v1381
    %1394 = vst.msk [vmem:[%s1392 + $0x8] sm:$0xff] %vm79, %v1383
    %1395 = vst.msk [vmem:[%s1392 + $0x80] sm:$0xff] %vm79, %v1385
    %1396 = vst.msk [vmem:[%s1392 + $0x88] sm:$0xff] %vm79, %v1387
    // Predicated region
    $region34: #{conv_block_forward.1} parent=1 // pred_check
      _
    $region35: #{conv_block_forward.1} parent=1 // pred_check_branch
      %1398 = sbr.rel (0) target = $region37
    $region36: #{conv_block_forward.1} parent=1 // pred_region
      %s1400 = ssub.s32 4096, 4096
      %1401 = vsyncadd [#allocation5], %s1400
      %s1402 = sshll.u32 [#allocation9], 4
      %s1403 = int_to_ptr.vmem [resolvable:$true] %s1402
      %1408 = dma.vmem_to_hbm [thread:$0]  %s1403, 4096, %s5, [#allocation5], 128, 128, 8
    $region37: #{conv_block_forward.1} parent=1 // pred_fallthru
      _
    // Predicated region
    $region38: #{conv_block_forward.1} parent=1 // pred_check
      _
    $region39: #{conv_block_forward.1} parent=1 // pred_check_branch
      %1410 = sbr.rel (0) target = $region41
    $region40: #{conv_block_forward.1} parent=1 // pred_region
      %1411 = dma.done [#allocation5], 4096
    $region41: #{conv_block_forward.1} parent=1 // pred_fallthru
      _
    %1412 = vsyncpa [#allocation4], 1
    %1413 = vsyncpa [#allocation7], 1
    %1414 = vsyncpa [#allocation5], 1

</llo_original>
